<compile_context>
chip_gen: v7x
topology: tpu7x:2x2x1
jax: 0.10.0
libtpu: 0.0.40
codegen_flags: <defaults>
</compile_context>

<pallas_src>
import functools

import jax
import jax.numpy as jnp
from jax import lax
from jax.experimental import pallas as pl
from jax.experimental.pallas import tpu as pltpu


# ---------------- fused Pallas kernel ----------------

def _stem_kernel(*args, Kt, Cin, Ho, Wo, Hh, Cout, pool):
    x_refs = args[:Kt]                      # Kt phase-split temporal halo frames
    b_ref, scale_ref, shift_ref, o_ref = args[Kt:]

    # ---- in-VMEM im2col: static unit-offset reads of the phase-split input ----
    taps = []
    for kt in range(Kt):
        xr = x_refs[kt]
        for kh in range(3):
            for kw in range(3):
                p = 2 * (kh % 2) + (kw % 2)       # spatial phase (row parity, col parity)
                dh, dw = kh // 2, kw // 2
                row0 = p * Hh + dh
                taps.append(xr[0, row0:row0 + Ho, dw:dw + Wo, :])   # (Ho, Wo, Cin) bf16
    a = jnp.concatenate(taps, axis=-1)                 # (Ho, Wo, Kt*9*Cin)
    a = a.reshape(Ho * Wo, Kt * 9 * Cin)               # im2col A-tile (bf16)

    # ---- conv = one MXU matmul, fused inference-BN + ReLU (f32) ----
    acc = jnp.dot(a, b_ref[...], preferred_element_type=jnp.float32)   # (Ho*Wo, Cout)
    y = acc * scale_ref[...] + shift_ref[...]
    y = jnp.maximum(y, 0.0)

    if not pool:
        o_ref[0] = y.reshape(Ho, Wo * Cout).astype(o_ref.dtype)
        return

    # ---- fused MaxPool3d([1,3,3], stride [1,2,2], pad [0,1,1]) ----
    # Zero padding is a valid stand-in for -inf here: every pool window contains
    # at least one real post-ReLU (>= 0) element.
    Hpo = (Ho - 1) // 2 + 1
    Wpo = (Wo - 1) // 2 + 1
    hp2 = 2 * Hpo + 2
    wp2 = 2 * Wpo + 2
    y3 = y.reshape(Ho, Wo, Cout)
    zr_t = jnp.zeros((1, Wo, Cout), jnp.float32)
    zr_b = jnp.zeros((hp2 - 1 - Ho, Wo, Cout), jnp.float32)
    yr = jnp.concatenate([zr_t, y3, zr_b], axis=0)               # (hp2, Wo, C)
    zc_l = jnp.zeros((hp2, 1, Cout), jnp.float32)
    zc_r = jnp.zeros((hp2, wp2 - 1 - Wo, Cout), jnp.float32)
    yp = jnp.concatenate([zc_l, yr, zc_r], axis=1)               # (hp2, wp2, C)

    # W direction: even/odd column phases, element-wise max chain (VPU).
    r = yp.reshape(hp2, Wpo + 1, 2, Cout)
    ce = r[:, :, 0, :]                                            # (hp2, Wpo+1, C)
    co = r[:, :, 1, :]
    pw = jnp.maximum(jnp.maximum(ce[:, :Wpo, :], co[:, :Wpo, :]), ce[:, 1:, :])   # (hp2, Wpo, C)

    # H direction: even/odd row phases.
    r2 = pw.reshape(Hpo + 1, 2, Wpo, Cout)
    re = r2[:, 0]
    ro = r2[:, 1]
    m = jnp.maximum(jnp.maximum(re[:Hpo], ro[:Hpo]), re[1:])      # (Hpo, Wpo, C)

    # lane-dense store: last dim = Wpo*Cout
    o_ref[0] = m.reshape(Hpo, Wpo * Cout).astype(o_ref.dtype)


# ---------------- wrapper ----------------

def stem_forward(x, w, gamma, beta, run_mean, run_var,
                 kernel=(3, 3, 3), stride=(1, 2, 2), padding=(1, 1, 1),
                 eps=1e-5, pool_layer=True):
    N, Cin, T, H, W = x.shape
    Cout = w.shape[0]
    Kt, Kh, Kw = kernel
    st, sh, sw = stride
    pt, ph, pw_ = padding
    if (Kh, Kw, sh, sw, ph, pw_) != (3, 3, 2, 2, 1, 1):
        raise NotImplementedError(
            "Pallas stem specialized to the X3D stem spatial config 3x3 / stride 2 / pad 1.")

    Tp = T + 2 * pt
    To = (T + 2 * pt - Kt) // st + 1
    Ho = (H + 2 * ph - Kh) // sh + 1
    Wo = (W + 2 * pw_ - Kw) // sw + 1
    Hh, Wh = Ho + 1, Wo + 1
    K = Kt * Kh * Kw * Cin

    # channels-last, bf16 in HBM (halves the dominant activation read traffic)
    xl = jnp.transpose(x.astype(jnp.bfloat16), (0, 2, 3, 4, 1))          # (N, T, H, W, Cin)
    xp = jnp.pad(xl, ((0, 0), (pt, pt), (ph, ph), (pw_, pw_), (0, 0)))   # (N, Tp, H+2, W+2, Cin)

    # even/odd spatial phase split so the in-kernel im2col needs only static
    # unit-offset slices (no strided VMEM access); ~1x input volume, not 27x.
    def phase(rp, cp):
        z = xp[:, :, rp::2, cp::2, :]
        z = z[:, :, :Hh, :Wh, :]
        return jnp.pad(z, ((0, 0), (0, 0), (0, Hh - z.shape[2]), (0, Wh - z.shape[3]), (0, 0)))

    xph = jnp.concatenate([phase(0, 0), phase(0, 1), phase(1, 0), phase(1, 1)], axis=2)
    xph = xph.reshape(N * Tp, 4 * Hh, Wh, Cin)                           # bf16

    B = jnp.transpose(w, (2, 3, 4, 1, 0)).reshape(K, Cout).astype(jnp.bfloat16)

    # Fold inference BN into per-channel scale / shift (f32).
    inv_std = 1.0 / jnp.sqrt(run_var + eps)
    scale = (gamma * inv_std).reshape(1, Cout).astype(jnp.float32)
    shift = (beta - run_mean * gamma * inv_std).reshape(1, Cout).astype(jnp.float32)

    if pool_layer:
        out_h = (Ho - 1) // 2 + 1
        out_w = (Wo - 1) // 2 + 1
    else:
        out_h, out_w = Ho, Wo

    kernel_fn = functools.partial(_stem_kernel, Kt=Kt, Cin=Cin, Ho=Ho, Wo=Wo,
                                  Hh=Hh, Cout=Cout, pool=pool_layer)

    # Kt shifted views of the same HBM array give the temporal halo; per-step
    # VMEM footprint is a few KB (demo) .. <1 MiB (realistic X3D), well under
    # the 32 MiB scoped default on v5e/v6e/v7x.
    in_specs = [
        pl.BlockSpec((1, 4 * Hh, Wh, Cin),
                     (lambda n, t, kt=kt: (n * Tp + t * st + kt, 0, 0, 0)))
        for kt in range(Kt)
    ] + [
        pl.BlockSpec((K, Cout), lambda n, t: (0, 0)),
        pl.BlockSpec((1, Cout), lambda n, t: (0, 0)),
        pl.BlockSpec((1, Cout), lambda n, t: (0, 0)),
    ]

    out = pl.pallas_call(
        kernel_fn,
        out_shape=jax.ShapeDtypeStruct((N * To, out_h, out_w * Cout), jnp.float32),
        grid_spec=pltpu.PrefetchScalarGridSpec(
            num_scalar_prefetch=0,
            grid=(N, To),
            in_specs=in_specs,
            out_specs=pl.BlockSpec((1, out_h, out_w * Cout),
                                   lambda n, t: (n * To + t, 0, 0)),
        ),
        compiler_params=pltpu.CompilerParams(
            dimension_semantics=("parallel", "parallel"),
            vmem_limit_bytes=32 * 1024 * 1024,
        ),
    )(*([xph] * Kt), B, scale, shift)

    y = out.reshape(N, To, out_h, out_w, Cout)
    return jnp.transpose(y, (0, 4, 1, 2, 3))     # NCTHW (matches PyTorch layout)


# ---------------- pure-JAX reference (for validation) ----------------

def reference(x, w, gamma, beta, rm, rv, eps=1e-5):
    y = lax.conv_general_dilated(
        x, w, window_strides=(1, 2, 2),
        padding=((1, 1), (1, 1), (1, 1)),
        dimension_numbers=("NCDHW", "OIDHW", "NCDHW"))
    inv = 1.0 / jnp.sqrt(rv + eps)
    y = (y - rm[None, :, None, None, None]) * (gamma * inv)[None, :, None, None, None] \
        + beta[None, :, None, None, None]
    y = jnp.maximum(y, 0.0)
    y = lax.reduce_window(
        y, -jnp.inf, lax.max,
        window_dimensions=(1, 1, 1, 3, 3),
        window_strides=(1, 1, 1, 2, 2),
        padding=((0, 0), (0, 0), (0, 0), (1, 1), (1, 1)))
    return y


if __name__ == "__main__":
    # Module-consistent config: dim_in=3, dim_out=8, kernel=[3,3,3],
    # stride=[1,2,2], padding=[1,1,1], num_groups=1, pool_layer=True.
    N, Cin, T, H, W = 2, 3, 4, 16, 16
    Cout = 8
    kernel, stride, padding = (3, 3, 3), (1, 2, 2), (1, 1, 1)
    eps = 1e-5

    key = jax.random.PRNGKey(0)
    kx, kw_, kg, kb, km, kv = jax.random.split(key, 6)

    x = jax.random.normal(kx, (N, Cin, T, H, W), dtype=jnp.float32)
    w = 0.1 * jax.random.normal(kw_, (Cout, Cin) + kernel, dtype=jnp.float32)
    gamma = 1.0 + 0.1 * jax.random.normal(kg, (Cout,), dtype=jnp.float32)
    beta = 0.1 * jax.random.normal(kb, (Cout,), dtype=jnp.float32)
    run_mean = 0.1 * jax.random.normal(km, (Cout,), dtype=jnp.float32)
    run_var = 1.0 + 0.1 * jnp.abs(jax.random.normal(kv, (Cout,), dtype=jnp.float32))

    fwd = jax.jit(functools.partial(stem_forward, kernel=kernel, stride=stride,
                                    padding=padding, eps=eps, pool_layer=True))
    out = jax.block_until_ready(fwd(x, w, gamma, beta, run_mean, run_var))

    ref = jax.block_until_ready(reference(x, w, gamma, beta, run_mean, run_var, eps))

    assert out.shape == ref.shape == (N, Cout, 4, 4, 4), (out.shape, ref.shape)
    assert bool(jnp.all(jnp.isfinite(out)))
    # bf16 activations/weights on the MXU vs f32 XLA conv -> loose tolerance.
    err = float(jnp.max(jnp.abs(out - ref)))
    assert bool(jnp.allclose(out, ref, atol=5e-2, rtol=5e-2)), err

    print("KERNEL_OK")
</pallas_src>

<mosaic_0001>
module attributes {stable_mosaic.version = 11 : i64} {
  func.func @_stem_kernel(%arg0: i32, %arg1: i32, %arg2: memref<1x36x9x3xbf16, #tpu.memory_space<vmem>>, %arg3: memref<1x36x9x3xbf16, #tpu.memory_space<vmem>>, %arg4: memref<1x36x9x3xbf16, #tpu.memory_space<vmem>>, %arg5: memref<81x8xbf16, #tpu.memory_space<vmem>>, %arg6: memref<1x8xf32, #tpu.memory_space<vmem>>, %arg7: memref<1x8xf32, #tpu.memory_space<vmem>>, %arg8: memref<1x4x32xf32, #tpu.memory_space<vmem>>) attributes {dimension_semantics = [#tpu.dimension_semantics<parallel>, #tpu.dimension_semantics<parallel>], iteration_bounds = array<i64: 2, 4>, scalar_prefetch = 0 : i64, scratch_operands = 0 : i64, tpu.core_type = #tpu.core_type<tc>, window_params = [{transform_indices = @transform_0, window_bounds = array<i64: 1, 36, 9, 3>}, {transform_indices = @transform_1, window_bounds = array<i64: 1, 36, 9, 3>}, {transform_indices = @transform_2, window_bounds = array<i64: 1, 36, 9, 3>}, {pipeline_mode = #tpu.pipeline_mode<synchronous>, transform_indices = @transform_3, window_bounds = array<i64: 81, 8>}, {pipeline_mode = #tpu.pipeline_mode<synchronous>, transform_indices = @transform_4, window_bounds = array<i64: 1, 8>}, {pipeline_mode = #tpu.pipeline_mode<synchronous>, transform_indices = @transform_5, window_bounds = array<i64: 1, 8>}, {transform_indices = @transform_6, window_bounds = array<i64: 1, 4, 32>}]} {
    %c0 = arith.constant 0 : index
    %c0_0 = arith.constant 0 : index
    %c0_1 = arith.constant 0 : index
    %c0_2 = arith.constant 0 : index
    %0 = vector.load %arg2[%c0, %c0_0, %c0_1, %c0_2] : memref<1x36x9x3xbf16, #tpu.memory_space<vmem>>, vector<1x8x8x3xbf16>
    %1 = vector.shape_cast %0 : vector<1x8x8x3xbf16> to vector<8x8x3xbf16>
    %c0_3 = arith.constant 0 : index
    %c9 = arith.constant 9 : index
    %c0_4 = arith.constant 0 : index
    %c0_5 = arith.constant 0 : index
    %2 = vector.load %arg2[%c0_3, %c9, %c0_4, %c0_5] : memref<1x36x9x3xbf16, #tpu.memory_space<vmem>>, vector<1x8x8x3xbf16>
    %3 = vector.shape_cast %2 : vector<1x8x8x3xbf16> to vector<8x8x3xbf16>
    %c0_6 = arith.constant 0 : index
    %c0_7 = arith.constant 0 : index
    %c1 = arith.constant 1 : index
    %c0_8 = arith.constant 0 : index
    %4 = vector.load %arg2[%c0_6, %c0_7, %c1, %c0_8] : memref<1x36x9x3xbf16, #tpu.memory_space<vmem>>, vector<1x8x8x3xbf16>
    %5 = vector.shape_cast %4 : vector<1x8x8x3xbf16> to vector<8x8x3xbf16>
    %c0_9 = arith.constant 0 : index
    %c18 = arith.constant 18 : index
    %c0_10 = arith.constant 0 : index
    %c0_11 = arith.constant 0 : index
    %6 = vector.load %arg2[%c0_9, %c18, %c0_10, %c0_11] : memref<1x36x9x3xbf16, #tpu.memory_space<vmem>>, vector<1x8x8x3xbf16>
    %7 = vector.shape_cast %6 : vector<1x8x8x3xbf16> to vector<8x8x3xbf16>
    %c0_12 = arith.constant 0 : index
    %c27 = arith.constant 27 : index
    %c0_13 = arith.constant 0 : index
    %c0_14 = arith.constant 0 : index
    %8 = vector.load %arg2[%c0_12, %c27, %c0_13, %c0_14] : memref<1x36x9x3xbf16, #tpu.memory_space<vmem>>, vector<1x8x8x3xbf16>
    %9 = vector.shape_cast %8 : vector<1x8x8x3xbf16> to vector<8x8x3xbf16>
    %c0_15 = arith.constant 0 : index
    %c18_16 = arith.constant 18 : index
    %c1_17 = arith.constant 1 : index
    %c0_18 = arith.constant 0 : index
    %10 = vector.load %arg2[%c0_15, %c18_16, %c1_17, %c0_18] : memref<1x36x9x3xbf16, #tpu.memory_space<vmem>>, vector<1x8x8x3xbf16>
    %11 = vector.shape_cast %10 : vector<1x8x8x3xbf16> to vector<8x8x3xbf16>
    %c0_19 = arith.constant 0 : index
    %c1_20 = arith.constant 1 : index
    %c0_21 = arith.constant 0 : index
    %c0_22 = arith.constant 0 : index
    %12 = vector.load %arg2[%c0_19, %c1_20, %c0_21, %c0_22] : memref<1x36x9x3xbf16, #tpu.memory_space<vmem>>, vector<1x8x8x3xbf16>
    %13 = vector.shape_cast %12 : vector<1x8x8x3xbf16> to vector<8x8x3xbf16>
    %c0_23 = arith.constant 0 : index
    %c10 = arith.constant 10 : index
    %c0_24 = arith.constant 0 : index
    %c0_25 = arith.constant 0 : index
    %14 = vector.load %arg2[%c0_23, %c10, %c0_24, %c0_25] : memref<1x36x9x3xbf16, #tpu.memory_space<vmem>>, vector<1x8x8x3xbf16>
    %15 = vector.shape_cast %14 : vector<1x8x8x3xbf16> to vector<8x8x3xbf16>
    %c0_26 = arith.constant 0 : index
    %c1_27 = arith.constant 1 : index
    %c1_28 = arith.constant 1 : index
    %c0_29 = arith.constant 0 : index
    %16 = vector.load %arg2[%c0_26, %c1_27, %c1_28, %c0_29] : memref<1x36x9x3xbf16, #tpu.memory_space<vmem>>, vector<1x8x8x3xbf16>
    %17 = vector.shape_cast %16 : vector<1x8x8x3xbf16> to vector<8x8x3xbf16>
    %c0_30 = arith.constant 0 : index
    %c0_31 = arith.constant 0 : index
    %c0_32 = arith.constant 0 : index
    %c0_33 = arith.constant 0 : index
    %18 = vector.load %arg3[%c0_30, %c0_31, %c0_32, %c0_33] : memref<1x36x9x3xbf16, #tpu.memory_space<vmem>>, vector<1x8x8x3xbf16>
    %19 = vector.shape_cast %18 : vector<1x8x8x3xbf16> to vector<8x8x3xbf16>
    %c0_34 = arith.constant 0 : index
    %c9_35 = arith.constant 9 : index
    %c0_36 = arith.constant 0 : index
    %c0_37 = arith.constant 0 : index
    %20 = vector.load %arg3[%c0_34, %c9_35, %c0_36, %c0_37] : memref<1x36x9x3xbf16, #tpu.memory_space<vmem>>, vector<1x8x8x3xbf16>
    %21 = vector.shape_cast %20 : vector<1x8x8x3xbf16> to vector<8x8x3xbf16>
    %c0_38 = arith.constant 0 : index
    %c0_39 = arith.constant 0 : index
    %c1_40 = arith.constant 1 : index
    %c0_41 = arith.constant 0 : index
    %22 = vector.load %arg3[%c0_38, %c0_39, %c1_40, %c0_41] : memref<1x36x9x3xbf16, #tpu.memory_space<vmem>>, vector<1x8x8x3xbf16>
    %23 = vector.shape_cast %22 : vector<1x8x8x3xbf16> to vector<8x8x3xbf16>
    %c0_42 = arith.constant 0 : index
    %c18_43 = arith.constant 18 : index
    %c0_44 = arith.constant 0 : index
    %c0_45 = arith.constant 0 : index
    %24 = vector.load %arg3[%c0_42, %c18_43, %c0_44, %c0_45] : memref<1x36x9x3xbf16, #tpu.memory_space<vmem>>, vector<1x8x8x3xbf16>
    %25 = vector.shape_cast %24 : vector<1x8x8x3xbf16> to vector<8x8x3xbf16>
    %c0_46 = arith.constant 0 : index
    %c27_47 = arith.constant 27 : index
    %c0_48 = arith.constant 0 : index
    %c0_49 = arith.constant 0 : index
    %26 = vector.load %arg3[%c0_46, %c27_47, %c0_48, %c0_49] : memref<1x36x9x3xbf16, #tpu.memory_space<vmem>>, vector<1x8x8x3xbf16>
    %27 = vector.shape_cast %26 : vector<1x8x8x3xbf16> to vector<8x8x3xbf16>
    %c0_50 = arith.constant 0 : index
    %c18_51 = arith.constant 18 : index
    %c1_52 = arith.constant 1 : index
    %c0_53 = arith.constant 0 : index
    %28 = vector.load %arg3[%c0_50, %c18_51, %c1_52, %c0_53] : memref<1x36x9x3xbf16, #tpu.memory_space<vmem>>, vector<1x8x8x3xbf16>
    %29 = vector.shape_cast %28 : vector<1x8x8x3xbf16> to vector<8x8x3xbf16>
    %c0_54 = arith.constant 0 : index
    %c1_55 = arith.constant 1 : index
    %c0_56 = arith.constant 0 : index
    %c0_57 = arith.constant 0 : index
    %30 = vector.load %arg3[%c0_54, %c1_55, %c0_56, %c0_57] : memref<1x36x9x3xbf16, #tpu.memory_space<vmem>>, vector<1x8x8x3xbf16>
    %31 = vector.shape_cast %30 : vector<1x8x8x3xbf16> to vector<8x8x3xbf16>
    %c0_58 = arith.constant 0 : index
    %c10_59 = arith.constant 10 : index
    %c0_60 = arith.constant 0 : index
    %c0_61 = arith.constant 0 : index
    %32 = vector.load %arg3[%c0_58, %c10_59, %c0_60, %c0_61] : memref<1x36x9x3xbf16, #tpu.memory_space<vmem>>, vector<1x8x8x3xbf16>
    %33 = vector.shape_cast %32 : vector<1x8x8x3xbf16> to vector<8x8x3xbf16>
    %c0_62 = arith.constant 0 : index
    %c1_63 = arith.constant 1 : index
    %c1_64 = arith.constant 1 : index
    %c0_65 = arith.constant 0 : index
    %34 = vector.load %arg3[%c0_62, %c1_63, %c1_64, %c0_65] : memref<1x36x9x3xbf16, #tpu.memory_space<vmem>>, vector<1x8x8x3xbf16>
    %35 = vector.shape_cast %34 : vector<1x8x8x3xbf16> to vector<8x8x3xbf16>
    %c0_66 = arith.constant 0 : index
    %c0_67 = arith.constant 0 : index
    %c0_68 = arith.constant 0 : index
    %c0_69 = arith.constant 0 : index
    %36 = vector.load %arg4[%c0_66, %c0_67, %c0_68, %c0_69] : memref<1x36x9x3xbf16, #tpu.memory_space<vmem>>, vector<1x8x8x3xbf16>
    %37 = vector.shape_cast %36 : vector<1x8x8x3xbf16> to vector<8x8x3xbf16>
    %c0_70 = arith.constant 0 : index
    %c9_71 = arith.constant 9 : index
    %c0_72 = arith.constant 0 : index
    %c0_73 = arith.constant 0 : index
    %38 = vector.load %arg4[%c0_70, %c9_71, %c0_72, %c0_73] : memref<1x36x9x3xbf16, #tpu.memory_space<vmem>>, vector<1x8x8x3xbf16>
    %39 = vector.shape_cast %38 : vector<1x8x8x3xbf16> to vector<8x8x3xbf16>
    %c0_74 = arith.constant 0 : index
    %c0_75 = arith.constant 0 : index
    %c1_76 = arith.constant 1 : index
    %c0_77 = arith.constant 0 : index
    %40 = vector.load %arg4[%c0_74, %c0_75, %c1_76, %c0_77] : memref<1x36x9x3xbf16, #tpu.memory_space<vmem>>, vector<1x8x8x3xbf16>
    %41 = vector.shape_cast %40 : vector<1x8x8x3xbf16> to vector<8x8x3xbf16>
    %c0_78 = arith.constant 0 : index
    %c18_79 = arith.constant 18 : index
    %c0_80 = arith.constant 0 : index
    %c0_81 = arith.constant 0 : index
    %42 = vector.load %arg4[%c0_78, %c18_79, %c0_80, %c0_81] : memref<1x36x9x3xbf16, #tpu.memory_space<vmem>>, vector<1x8x8x3xbf16>
    %43 = vector.shape_cast %42 : vector<1x8x8x3xbf16> to vector<8x8x3xbf16>
    %c0_82 = arith.constant 0 : index
    %c27_83 = arith.constant 27 : index
    %c0_84 = arith.constant 0 : index
    %c0_85 = arith.constant 0 : index
    %44 = vector.load %arg4[%c0_82, %c27_83, %c0_84, %c0_85] : memref<1x36x9x3xbf16, #tpu.memory_space<vmem>>, vector<1x8x8x3xbf16>
    %45 = vector.shape_cast %44 : vector<1x8x8x3xbf16> to vector<8x8x3xbf16>
    %c0_86 = arith.constant 0 : index
    %c18_87 = arith.constant 18 : index
    %c1_88 = arith.constant 1 : index
    %c0_89 = arith.constant 0 : index
    %46 = vector.load %arg4[%c0_86, %c18_87, %c1_88, %c0_89] : memref<1x36x9x3xbf16, #tpu.memory_space<vmem>>, vector<1x8x8x3xbf16>
    %47 = vector.shape_cast %46 : vector<1x8x8x3xbf16> to vector<8x8x3xbf16>
    %c0_90 = arith.constant 0 : index
    %c1_91 = arith.constant 1 : index
    %c0_92 = arith.constant 0 : index
    %c0_93 = arith.constant 0 : index
    %48 = vector.load %arg4[%c0_90, %c1_91, %c0_92, %c0_93] : memref<1x36x9x3xbf16, #tpu.memory_space<vmem>>, vector<1x8x8x3xbf16>
    %49 = vector.shape_cast %48 : vector<1x8x8x3xbf16> to vector<8x8x3xbf16>
    %c0_94 = arith.constant 0 : index
    %c10_95 = arith.constant 10 : index
    %c0_96 = arith.constant 0 : index
    %c0_97 = arith.constant 0 : index
    %50 = vector.load %arg4[%c0_94, %c10_95, %c0_96, %c0_97] : memref<1x36x9x3xbf16, #tpu.memory_space<vmem>>, vector<1x8x8x3xbf16>
    %51 = vector.shape_cast %50 : vector<1x8x8x3xbf16> to vector<8x8x3xbf16>
    %c0_98 = arith.constant 0 : index
    %c1_99 = arith.constant 1 : index
    %c1_100 = arith.constant 1 : index
    %c0_101 = arith.constant 0 : index
    %52 = vector.load %arg4[%c0_98, %c1_99, %c1_100, %c0_101] : memref<1x36x9x3xbf16, #tpu.memory_space<vmem>>, vector<1x8x8x3xbf16>
    %53 = vector.shape_cast %52 : vector<1x8x8x3xbf16> to vector<8x8x3xbf16>
    %54 = tpu.concatenate %1, %3, %5, %7, %9, %11, %13, %15, %17, %19, %21, %23, %25, %27, %29, %31 in 2 : vector<8x8x3xbf16>, vector<8x8x3xbf16>, vector<8x8x3xbf16>, vector<8x8x3xbf16>, vector<8x8x3xbf16>, vector<8x8x3xbf16>, vector<8x8x3xbf16>, vector<8x8x3xbf16>, vector<8x8x3xbf16>, vector<8x8x3xbf16>, vector<8x8x3xbf16>, vector<8x8x3xbf16>, vector<8x8x3xbf16>, vector<8x8x3xbf16>, vector<8x8x3xbf16>, vector<8x8x3xbf16> -> vector<8x8x48xbf16>
    %55 = tpu.concatenate %33, %35, %37, %39, %41, %43, %45, %47, %49, %51, %53 in 2 : vector<8x8x3xbf16>, vector<8x8x3xbf16>, vector<8x8x3xbf16>, vector<8x8x3xbf16>, vector<8x8x3xbf16>, vector<8x8x3xbf16>, vector<8x8x3xbf16>, vector<8x8x3xbf16>, vector<8x8x3xbf16>, vector<8x8x3xbf16>, vector<8x8x3xbf16> -> vector<8x8x33xbf16>
    %56 = tpu.concatenate %54, %55 in 2 : vector<8x8x48xbf16>, vector<8x8x33xbf16> -> vector<8x8x81xbf16>
    %57 = vector.shape_cast %56 : vector<8x8x81xbf16> to vector<64x81xbf16>
    %c0_102 = arith.constant 0 : index
    %c0_103 = arith.constant 0 : index
    %58 = vector.load %arg5[%c0_102, %c0_103] : memref<81x8xbf16, #tpu.memory_space<vmem>>, vector<81x8xbf16>
    %cst = arith.constant dense<0.000000e+00> : vector<64x8xf32>
    %59 = tpu.matmul %57, %58, %cst {dimension_numbers = #tpu.dot_dimension_numbers<[1], [0], [0], [1], [0, 0, 1, 1], [], []>} : vector<64x81xbf16>, vector<81x8xbf16>, vector<64x8xf32> -> vector<64x8xf32>
    %c0_104 = arith.constant 0 : index
    %c0_105 = arith.constant 0 : index
    %60 = vector.load %arg6[%c0_104, %c0_105] : memref<1x8xf32, #tpu.memory_space<vmem>>, vector<1x8xf32>
    %61 = vector.broadcast %60 : vector<1x8xf32> to vector<64x8xf32>
    %62 = arith.mulf %59, %61 : vector<64x8xf32>
    %c0_106 = arith.constant 0 : index
    %c0_107 = arith.constant 0 : index
    %63 = vector.load %arg7[%c0_106, %c0_107] : memref<1x8xf32, #tpu.memory_space<vmem>>, vector<1x8xf32>
    %64 = vector.broadcast %63 : vector<1x8xf32> to vector<64x8xf32>
    %65 = arith.addf %62, %64 : vector<64x8xf32>
    %cst_108 = arith.constant 0.000000e+00 : f32
    %66 = vector.broadcast %cst_108 : f32 to vector<64x8xf32>
    %67 = arith.maximumf %65, %66 : vector<64x8xf32>
    %68 = vector.shape_cast %67 : vector<64x8xf32> to vector<8x8x8xf32>
    %cst_109 = arith.constant 0.000000e+00 : f32
    %69 = vector.broadcast %cst_109 : f32 to vector<1x8x8xf32>
    %cst_110 = arith.constant 0.000000e+00 : f32
    %70 = vector.broadcast %cst_110 : f32 to vector<1x8x8xf32>
    %71 = tpu.concatenate %69, %68, %70 in 0 : vector<1x8x8xf32>, vector<8x8x8xf32>, vector<1x8x8xf32> -> vector<10x8x8xf32>
    %cst_111 = arith.constant 0.000000e+00 : f32
    %72 = vector.broadcast %cst_111 : f32 to vector<10x1x8xf32>
    %cst_112 = arith.constant 0.000000e+00 : f32
    %73 = vector.broadcast %cst_112 : f32 to vector<10x1x8xf32>
    %74 = tpu.concatenate %72, %71, %73 in 1 : vector<10x1x8xf32>, vector<10x8x8xf32>, vector<10x1x8xf32> -> vector<10x10x8xf32>
    %75 = vector.shape_cast %74 : vector<10x10x8xf32> to vector<10x5x2x8xf32>
    %76 = vector.extract_strided_slice %75 {offsets = [0, 0, 0, 0], sizes = [10, 5, 1, 8], strides = [1, 1, 1, 1]} : vector<10x5x2x8xf32> to vector<10x5x1x8xf32>
    %77 = vector.shape_cast %76 : vector<10x5x1x8xf32> to vector<10x5x8xf32>
    %78 = vector.extract_strided_slice %75 {offsets = [0, 0, 1, 0], sizes = [10, 5, 1, 8], strides = [1, 1, 1, 1]} : vector<10x5x2x8xf32> to vector<10x5x1x8xf32>
    %79 = vector.shape_cast %78 : vector<10x5x1x8xf32> to vector<10x5x8xf32>
    %80 = vector.extract_strided_slice %77 {offsets = [0, 0, 0], sizes = [10, 4, 8], strides = [1, 1, 1]} : vector<10x5x8xf32> to vector<10x4x8xf32>
    %81 = vector.extract_strided_slice %79 {offsets = [0, 0, 0], sizes = [10, 4, 8], strides = [1, 1, 1]} : vector<10x5x8xf32> to vector<10x4x8xf32>
    %82 = arith.maximumf %80, %81 : vector<10x4x8xf32>
    %83 = vector.extract_strided_slice %77 {offsets = [0, 1, 0], sizes = [10, 4, 8], strides = [1, 1, 1]} : vector<10x5x8xf32> to vector<10x4x8xf32>
    %84 = arith.maximumf %82, %83 : vector<10x4x8xf32>
    %85 = vector.shape_cast %84 : vector<10x4x8xf32> to vector<5x2x4x8xf32>
    %86 = vector.extract_strided_slice %85 {offsets = [0, 0, 0, 0], sizes = [5, 1, 4, 8], strides = [1, 1, 1, 1]} : vector<5x2x4x8xf32> to vector<5x1x4x8xf32>
    %87 = vector.shape_cast %86 : vector<5x1x4x8xf32> to vector<5x4x8xf32>
    %88 = vector.extract_strided_slice %85 {offsets = [0, 1, 0, 0], sizes = [5, 1, 4, 8], strides = [1, 1, 1, 1]} : vector<5x2x4x8xf32> to vector<5x1x4x8xf32>
    %89 = vector.shape_cast %88 : vector<5x1x4x8xf32> to vector<5x4x8xf32>
    %90 = vector.extract_strided_slice %87 {offsets = [0, 0, 0], sizes = [4, 4, 8], strides = [1, 1, 1]} : vector<5x4x8xf32> to vector<4x4x8xf32>
    %91 = vector.extract_strided_slice %89 {offsets = [0, 0, 0], sizes = [4, 4, 8], strides = [1, 1, 1]} : vector<5x4x8xf32> to vector<4x4x8xf32>
    %92 = arith.maximumf %90, %91 : vector<4x4x8xf32>
    %93 = vector.extract_strided_slice %87 {offsets = [1, 0, 0], sizes = [4, 4, 8], strides = [1, 1, 1]} : vector<5x4x8xf32> to vector<4x4x8xf32>
    %94 = arith.maximumf %92, %93 : vector<4x4x8xf32>
    %95 = vector.shape_cast %94 : vector<4x4x8xf32> to vector<4x32xf32>
    %c0_113 = arith.constant 0 : index
    %c0_114 = arith.constant 0 : index
    %c0_115 = arith.constant 0 : index
    %96 = vector.load %arg8[%c0_113, %c0_114, %c0_115] : memref<1x4x32xf32, #tpu.memory_space<vmem>>, vector<1x4x32xf32>
    %97 = vector.shape_cast %96 : vector<1x4x32xf32> to vector<4x32xf32>
    %98 = vector.shape_cast %95 : vector<4x32xf32> to vector<1x4x32xf32>
    tpu.vector_store %arg8[%c0_113, %c0_114, %c0_115], %98 {strides = array<i32>} : memref<1x4x32xf32, #tpu.memory_space<vmem>>, vector<1x4x32xf32>,
    return
  }
  func.func @transform_0(%arg0: i32, %arg1: i32) -> (i32, i32, i32, i32) {
    %c6_i32 = arith.constant 6 : i32
    %0 = arith.muli %arg0, %c6_i32 : i32
    %c1_i32 = arith.constant 1 : i32
    %1 = arith.muli %arg1, %c1_i32 : i32
    %2 = arith.addi %0, %1 : i32
    %c0_i32 = arith.constant 0 : i32
    %3 = arith.addi %2, %c0_i32 : i32
    %c0_i32_0 = arith.constant 0 : i32
    %c0_i32_1 = arith.constant 0 : i32
    %c0_i32_2 = arith.constant 0 : i32
    %c0_i32_3 = arith.constant 0 : i32
    return %3, %c0_i32_0, %c0_i32_1, %c0_i32_2 : i32, i32, i32, i32
  }
  func.func @transform_1(%arg0: i32, %arg1: i32) -> (i32, i32, i32, i32) {
    %c6_i32 = arith.constant 6 : i32
    %0 = arith.muli %arg0, %c6_i32 : i32
    %c1_i32 = arith.constant 1 : i32
    %1 = arith.muli %arg1, %c1_i32 : i32
    %2 = arith.addi %0, %1 : i32
    %c1_i32_0 = arith.constant 1 : i32
    %3 = arith.addi %2, %c1_i32_0 : i32
    %c0_i32 = arith.constant 0 : i32
    %c0_i32_1 = arith.constant 0 : i32
    %c0_i32_2 = arith.constant 0 : i32
    %c0_i32_3 = arith.constant 0 : i32
    return %3, %c0_i32, %c0_i32_1, %c0_i32_2 : i32, i32, i32, i32
  }
  func.func @transform_2(%arg0: i32, %arg1: i32) -> (i32, i32, i32, i32) {
    %c6_i32 = arith.constant 6 : i32
    %0 = arith.muli %arg0, %c6_i32 : i32
    %c1_i32 = arith.constant 1 : i32
    %1 = arith.muli %arg1, %c1_i32 : i32
    %2 = arith.addi %0, %1 : i32
    %c2_i32 = arith.constant 2 : i32
    %3 = arith.addi %2, %c2_i32 : i32
    %c0_i32 = arith.constant 0 : i32
    %c0_i32_0 = arith.constant 0 : i32
    %c0_i32_1 = arith.constant 0 : i32
    %c0_i32_2 = arith.constant 0 : i32
    return %3, %c0_i32, %c0_i32_0, %c0_i32_1 : i32, i32, i32, i32
  }
  func.func @transform_3(%arg0: i32, %arg1: i32) -> (i32, i32) {
    %c0_i32 = arith.constant 0 : i32
    %c0_i32_0 = arith.constant 0 : i32
    %c0_i32_1 = arith.constant 0 : i32
    return %c0_i32, %c0_i32_0 : i32, i32
  }
  func.func @transform_4(%arg0: i32, %arg1: i32) -> (i32, i32) {
    %c0_i32 = arith.constant 0 : i32
    %c0_i32_0 = arith.constant 0 : i32
    %c0_i32_1 = arith.constant 0 : i32
    return %c0_i32, %c0_i32_0 : i32, i32
  }
  func.func @transform_5(%arg0: i32, %arg1: i32) -> (i32, i32) {
    %c0_i32 = arith.constant 0 : i32
    %c0_i32_0 = arith.constant 0 : i32
    %c0_i32_1 = arith.constant 0 : i32
    return %c0_i32, %c0_i32_0 : i32, i32
  }
  func.func @transform_6(%arg0: i32, %arg1: i32) -> (i32, i32, i32) {
    %c4_i32 = arith.constant 4 : i32
    %0 = arith.muli %arg0, %c4_i32 : i32
    %1 = arith.addi %0, %arg1 : i32
    %c0_i32 = arith.constant 0 : i32
    %c0_i32_0 = arith.constant 0 : i32
    %c0_i32_1 = arith.constant 0 : i32
    return %1, %c0_i32, %c0_i32_0 : i32, i32, i32
  }
}

</mosaic_0001>

<llo_original>
// kernel: stem_forward.1
$region0: #{stem_forward.1}
  #allocation0 [shape = 'u32[]', space=smem, size = 0x4, offset = 0x4, fixed_abs, tag = 'smem constant byte address 0x4 - core index']
  #allocation1 [shape = 'u32[144,128]{1,0:T(1,128)}', space=vmem, size = 0x12000, scoped, tag = 'internal scratch']
  %s0 = inlined_call_operand.vmem [shape: bf16[12,36,9,3], index: 0, kind: input, shape index: {}, may-alias: {0,1,2}]
  %s1 = inlined_call_operand.vmem [shape: bf16[12,36,9,3], index: 1, kind: input, shape index: {}, may-alias: {0,1,2}]
  %s2 = inlined_call_operand.vmem [shape: bf16[12,36,9,3], index: 2, kind: input, shape index: {}, may-alias: {0,1,2}]
  %s3 = inlined_call_operand.vmem [shape: bf16[81,8], index: 3, kind: input, shape index: {}]
  %s4 = inlined_call_operand.vmem [shape: f32[1,8], index: 4, kind: input, shape index: {}]
  %s5 = inlined_call_operand.vmem [shape: f32[1,8], index: 5, kind: input, shape index: {}]
  %s6 = inlined_call_operand.vmem [shape: f32[8,4,32], index: 6, kind: output, shape index: {}]
  %s7 = sld [smem:[#allocation0]]
  $region57: #{stem_forward.1} parent=0
    _
  %s9 = ssub.s32 1, %s7
  %s10 = scalar_select 0, %s9, %s7
  loop: start=0, step=1, limit=10
  $region2: #{stem_forward.1} parent=0 // loop_pre_header
    _
  $region3: #{stem_forward.1} parent=0 // loop_header
    %s12 = sphi 0, %s16
    %p13 = scmp.ge.s32.totalorder %s12, 10
    %s19 = sphi 0, %s31
    %s20 = sphi 0, %s27
    %s21 = sphi 0, %s19
    %s22 = sphi 0, %s20
    %s23 = sphi 0, %s21
    %s24 = sphi 0, %s22
    %s38 = sphi 0, %s40
    %s41 = sphi 0, %s38
    %s42 = sphi 0, %s41
    %s58 = sphi 0, %s42
    %s70 = sphi 0, %s72
    %s73 = sphi 0, %s70
    %s74 = sphi 0, %s73
    %s90 = sphi 0, %s74
    %s102 = sphi 0, %s104
    %s105 = sphi 0, %s102
    %s106 = sphi 0, %s105
    %s122 = sphi 0, %s106
    %s126 = sphi 0, %s126
    %s128 = sphi 0, %s126
    %s129 = sphi 0, %s128
    %s143 = sphi 0, %s129
    %s147 = sphi 0, %s147
    %s149 = sphi 0, %s147
    %s150 = sphi 0, %s149
    %s164 = sphi 0, %s150
    %s168 = sphi 0, %s168
    %s170 = sphi 0, %s168
    %s171 = sphi 0, %s170
    %s185 = sphi 0, %s171
    %s195 = sphi 0, %s197
    %s198 = sphi 0, %s195
    %s199 = sphi 0, %s198
    %s215 = sphi 0, %s199
  $region4: #{stem_forward.1} parent=0 // loop_header_branch
    %15 = sbr.rel (%p13) target = $region8
  $region5: #{stem_forward.1} parent=0 // loop_body
    %s17 = ssub.s32 %s12, 1
    %s18 = ssub.s32 %s12, 2
    %s25 = sadd.s32 1, %s20
    %p26 = scmp.ge.s32.totalorder %s25, 4
    %s27 = scalar_select %p26, 0, %s25
    %s28 = sadd.s32 1, %s19
    %s29 = scalar_select %p26, %s28, %s19
    %p30 = scmp.ge.s32.totalorder %s29, 2
    %s31 = scalar_select %p30, 0, %s29
    %s32 = smul.u32 %s19, 6
    %s33 = sadd.s32 %s32, %s20
    %s34 = smul.u32 %s31, 6
    %s35 = sadd.s32 %s34, %s27
    %s36 = ssub.s32 %s33, %s35
    %p37 = scmp.eq.s32.totalorder %s36, 0
    %s39 = sadd.s32 %s38, 1
    %s40 = scalar_select %p37, %s38, %s39
    %p43 = pneg %p37
    %p44 = scmp.eq.s32.totalorder %s12, 7
    %p45 = por %p43, %p44
    %p46 = scmp.ne.s32.totalorder %s38, %s41
    %p47 = scmp.eq.s32.totalorder %s12, 0
    %p48 = por %p46, %p47
    %p49 = scmp.ne.s32.totalorder %s38, %s41
    %p50 = scmp.eq.s32.totalorder %s17, 7
    %p51 = por %p49, %p50
    %p52 = scmp.ne.s32.totalorder %s41, %s42
    %p53 = scmp.eq.s32.totalorder %s17, 0
    %p54 = por %p52, %p53
    %p55 = scmp.ne.s32.totalorder %s41, %s42
    %p56 = scmp.eq.s32.totalorder %s18, 7
    %p57 = por %p55, %p56
    %p59 = scmp.ne.s32.totalorder %s42, %s58
    %p60 = scmp.eq.s32.totalorder %s18, 0
    %p61 = por %p59, %p60
    %s62 = smul.u32 %s19, 6
    %s63 = sadd.s32 %s62, %s20
    %s64 = sadd.s32 %s63, 1
    %s65 = smul.u32 %s31, 6
    %s66 = sadd.s32 %s65, %s27
    %s67 = sadd.s32 %s66, 1
    %s68 = ssub.s32 %s64, %s67
    %p69 = scmp.eq.s32.totalorder %s68, 0
    %s71 = sadd.s32 %s70, 1
    %s72 = scalar_select %p69, %s70, %s71
    %p75 = pneg %p69
    %p76 = scmp.eq.s32.totalorder %s12, 7
    %p77 = por %p75, %p76
    %p78 = scmp.ne.s32.totalorder %s70, %s73
    %p79 = scmp.eq.s32.totalorder %s12, 0
    %p80 = por %p78, %p79
    %p81 = scmp.ne.s32.totalorder %s70, %s73
    %p82 = scmp.eq.s32.totalorder %s17, 7
    %p83 = por %p81, %p82
    %p84 = scmp.ne.s32.totalorder %s73, %s74
    %p85 = scmp.eq.s32.totalorder %s17, 0
    %p86 = por %p84, %p85
    %p87 = scmp.ne.s32.totalorder %s73, %s74
    %p88 = scmp.eq.s32.totalorder %s18, 7
    %p89 = por %p87, %p88
    %p91 = scmp.ne.s32.totalorder %s74, %s90
    %p92 = scmp.eq.s32.totalorder %s18, 0
    %p93 = por %p91, %p92
    %s94 = smul.u32 %s19, 6
    %s95 = sadd.s32 %s94, %s20
    %s96 = sadd.s32 %s95, 2
    %s97 = smul.u32 %s31, 6
    %s98 = sadd.s32 %s97, %s27
    %s99 = sadd.s32 %s98, 2
    %s100 = ssub.s32 %s96, %s99
    %p101 = scmp.eq.s32.totalorder %s100, 0
    %s103 = sadd.s32 %s102, 1
    %s104 = scalar_select %p101, %s102, %s103
    %p107 = pneg %p101
    %p108 = scmp.eq.s32.totalorder %s12, 7
    %p109 = por %p107, %p108
    %p110 = scmp.ne.s32.totalorder %s102, %s105
    %p111 = scmp.eq.s32.totalorder %s12, 0
    %p112 = por %p110, %p111
    %p113 = scmp.ne.s32.totalorder %s102, %s105
    %p114 = scmp.eq.s32.totalorder %s17, 7
    %p115 = por %p113, %p114
    %p116 = scmp.ne.s32.totalorder %s105, %s106
    %p117 = scmp.eq.s32.totalorder %s17, 0
    %p118 = por %p116, %p117
    %p119 = scmp.ne.s32.totalorder %s105, %s106
    %p120 = scmp.eq.s32.totalorder %s18, 7
    %p121 = por %p119, %p120
    %p123 = scmp.ne.s32.totalorder %s106, %s122
    %p124 = scmp.eq.s32.totalorder %s18, 0
    %p125 = por %p123, %p124
    %s127 = sadd.s32 %s126, 1
    %p130 = scmp.eq.s32.totalorder %s12, 7
    %p131 = scmp.ne.s32.totalorder %s126, %s128
    %p132 = scmp.eq.s32.totalorder %s12, 0
    %p133 = por %p131, %p132
    %p134 = scmp.ne.s32.totalorder %s126, %s128
    %p135 = scmp.eq.s32.totalorder %s17, 7
    %p136 = por %p134, %p135
    %p137 = scmp.ne.s32.totalorder %s128, %s129
    %p138 = scmp.eq.s32.totalorder %s17, 0
    %p139 = por %p137, %p138
    %p140 = scmp.ne.s32.totalorder %s128, %s129
    %p141 = scmp.eq.s32.totalorder %s18, 7
    %p142 = por %p140, %p141
    %p144 = scmp.ne.s32.totalorder %s129, %s143
    %p145 = scmp.eq.s32.totalorder %s18, 0
    %p146 = por %p144, %p145
    %s148 = sadd.s32 %s147, 1
    %p151 = scmp.eq.s32.totalorder %s12, 7
    %p152 = scmp.ne.s32.totalorder %s147, %s149
    %p153 = scmp.eq.s32.totalorder %s12, 0
    %p154 = por %p152, %p153
    %p155 = scmp.ne.s32.totalorder %s147, %s149
    %p156 = scmp.eq.s32.totalorder %s17, 7
    %p157 = por %p155, %p156
    %p158 = scmp.ne.s32.totalorder %s149, %s150
    %p159 = scmp.eq.s32.totalorder %s17, 0
    %p160 = por %p158, %p159
    %p161 = scmp.ne.s32.totalorder %s149, %s150
    %p162 = scmp.eq.s32.totalorder %s18, 7
    %p163 = por %p161, %p162
    %p165 = scmp.ne.s32.totalorder %s150, %s164
    %p166 = scmp.eq.s32.totalorder %s18, 0
    %p167 = por %p165, %p166
    %s169 = sadd.s32 %s168, 1
    %p172 = scmp.eq.s32.totalorder %s12, 7
    %p173 = scmp.ne.s32.totalorder %s168, %s170
    %p174 = scmp.eq.s32.totalorder %s12, 0
    %p175 = por %p173, %p174
    %p176 = scmp.ne.s32.totalorder %s168, %s170
    %p177 = scmp.eq.s32.totalorder %s17, 7
    %p178 = por %p176, %p177
    %p179 = scmp.ne.s32.totalorder %s170, %s171
    %p180 = scmp.eq.s32.totalorder %s17, 0
    %p181 = por %p179, %p180
    %p182 = scmp.ne.s32.totalorder %s170, %s171
    %p183 = scmp.eq.s32.totalorder %s18, 7
    %p184 = por %p182, %p183
    %p186 = scmp.ne.s32.totalorder %s171, %s185
    %p187 = scmp.eq.s32.totalorder %s18, 0
    %p188 = por %p186, %p187
    %s189 = smul.u32 %s19, 4
    %s190 = sadd.s32 %s189, %s20
    %s191 = smul.u32 %s31, 4
    %s192 = sadd.s32 %s191, %s27
    %s193 = ssub.s32 %s190, %s192
    %p194 = scmp.eq.s32.totalorder %s193, 0
    %s196 = sadd.s32 %s195, 1
    %s197 = scalar_select %p194, %s195, %s196
    %p200 = pneg %p194
    %p201 = scmp.eq.s32.totalorder %s12, 7
    %p202 = por %p200, %p201
    %p203 = scmp.ne.s32.totalorder %s195, %s198
    %p204 = scmp.eq.s32.totalorder %s12, 0
    %p205 = por %p203, %p204
    %p206 = scmp.ne.s32.totalorder %s195, %s198
    %p207 = scmp.eq.s32.totalorder %s17, 7
    %p208 = por %p206, %p207
    %p209 = scmp.ne.s32.totalorder %s198, %s199
    %p210 = scmp.eq.s32.totalorder %s17, 0
    %p211 = por %p209, %p210
    %p212 = scmp.ne.s32.totalorder %s198, %s199
    %p213 = scmp.eq.s32.totalorder %s18, 7
    %p214 = por %p212, %p213
    %p216 = scmp.ne.s32.totalorder %s199, %s215
    %p217 = scmp.eq.s32.totalorder %s18, 0
    %p218 = por %p216, %p217
    %p219 = scmp.le.s32.totalorder 1, %s12
    %p220 = scmp.lt.s32.totalorder %s12, 9
    %p221 = pnand %p219, %p220
    %p222 = pneg %p221
    // Predicated region
    $region9: #{stem_forward.1} parent=5 // pred_check
      _
    $region10: #{stem_forward.1} parent=5 // pred_check_branch
      %224 = sbr.rel (%p221) target = $region12
    $region11: #{stem_forward.1} parent=5 // pred_region
      %s225 = ssub.s32 %s12, 1
      // Predicated region
      $region13: #{stem_forward.1} parent=11 // pred_check
        %p226 = pneg %p139
      $region14: #{stem_forward.1} parent=11 // pred_check_branch
        %228 = sbr.rel (%p226) target = $region16
      $region15: #{stem_forward.1} parent=11 // pred_region
        _
      $region16: #{stem_forward.1} parent=11 // pred_fallthru
        _
      // Predicated region
      $region17: #{stem_forward.1} parent=11 // pred_check
        %p229 = pneg %p160
      $region18: #{stem_forward.1} parent=11 // pred_check_branch
        %231 = sbr.rel (%p229) target = $region20
      $region19: #{stem_forward.1} parent=11 // pred_region
        _
      $region20: #{stem_forward.1} parent=11 // pred_fallthru
        _
      // Predicated region
      $region21: #{stem_forward.1} parent=11 // pred_check
        %p232 = pneg %p181
      $region22: #{stem_forward.1} parent=11 // pred_check_branch
        %234 = sbr.rel (%p232) target = $region24
      $region23: #{stem_forward.1} parent=11 // pred_region
        _
      $region24: #{stem_forward.1} parent=11 // pred_fallthru
        _
    $region12: #{stem_forward.1} parent=5 // pred_fallthru
      _
    %p235 = scmp.lt.s32.totalorder %s12, 8
    // Predicated region
    $region25: #{stem_forward.1} parent=5 // pred_check
      %p236 = pneg %p235
    $region26: #{stem_forward.1} parent=5 // pred_check_branch
      %238 = sbr.rel (%p236) target = $region28
    $region27: #{stem_forward.1} parent=5 // pred_region
      // Predicated region
      $region29: #{stem_forward.1} parent=27 // pred_check
        %p239 = pneg %p48
      $region30: #{stem_forward.1} parent=27 // pred_check_branch
        %241 = sbr.rel (%p239) target = $region32
      $region31: #{stem_forward.1} parent=27 // pred_region
        %s242 = smul.u32 %s19, 6
        %s243 = sadd.s32 %s242, %s20
        %p244 = scmp.lt.s32.totalorder %s243, 11
        %s245 = scalar_select %p244, %s243, 11
        %s246 = smul.addr %s245, 72
        %s247 = smul.addr %s246, 4
        %s248 = scalar_lea.vmem %s0, %s247
        %s249 = smul.u32 %s19, 6
        %s250 = sadd.s32 %s249, %s20
      $region32: #{stem_forward.1} parent=27 // pred_fallthru
        _
      // Predicated region
      $region33: #{stem_forward.1} parent=27 // pred_check
        %p251 = pneg %p80
      $region34: #{stem_forward.1} parent=27 // pred_check_branch
        %253 = sbr.rel (%p251) target = $region36
      $region35: #{stem_forward.1} parent=27 // pred_region
        %s254 = smul.u32 %s19, 6
        %s255 = sadd.s32 %s254, %s20
        %s256 = sadd.s32 %s255, 1
        %p257 = scmp.lt.s32.totalorder %s256, 11
        %s258 = scalar_select %p257, %s256, 11
        %s259 = smul.addr %s258, 72
        %s260 = smul.addr %s259, 4
        %s261 = scalar_lea.vmem %s1, %s260
        %s262 = smul.u32 %s19, 6
        %s263 = sadd.s32 %s262, %s20
        %s264 = sadd.s32 %s263, 1
      $region36: #{stem_forward.1} parent=27 // pred_fallthru
        _
      // Predicated region
      $region37: #{stem_forward.1} parent=27 // pred_check
        %p265 = pneg %p112
      $region38: #{stem_forward.1} parent=27 // pred_check_branch
        %267 = sbr.rel (%p265) target = $region40
      $region39: #{stem_forward.1} parent=27 // pred_region
        %s268 = smul.u32 %s19, 6
        %s269 = sadd.s32 %s268, %s20
        %s270 = sadd.s32 %s269, 2
        %p271 = scmp.lt.s32.totalorder %s270, 11
        %s272 = scalar_select %p271, %s270, 11
        %s273 = smul.addr %s272, 72
        %s274 = smul.addr %s273, 4
        %s275 = scalar_lea.vmem %s2, %s274
        %s276 = smul.u32 %s19, 6
        %s277 = sadd.s32 %s276, %s20
        %s278 = sadd.s32 %s277, 2
      $region40: #{stem_forward.1} parent=27 // pred_fallthru
        _
    $region28: #{stem_forward.1} parent=5 // pred_fallthru
      _
    %p279 = scmp.le.s32.totalorder 1, %s12
    %p280 = scmp.lt.s32.totalorder %s12, 9
    %p281 = pnand %p279, %p280
    %p282 = pneg %p281
    // Predicated region
    $region41: #{stem_forward.1} parent=5 // pred_check
      _
    $region42: #{stem_forward.1} parent=5 // pred_check_branch
      %284 = sbr.rel (%p281) target = $region44
    $region43: #{stem_forward.1} parent=5 // pred_region
      %s285 = ssub.s32 %s12, 1
      %s286 = smul.u32 %s21, 6
      %s287 = sadd.s32 %s286, %s22
      %p288 = scmp.lt.s32.totalorder %s287, 11
      %s289 = scalar_select %p288, %s287, 11
      %s290 = smul.addr %s289, 72
      %s291 = smul.addr %s290, 4
      %s292 = scalar_lea.vmem %s0, %s291
      %p293 = pneg %p54
      %p294 = pneg %p51
      %s295 = smul.u32 %s21, 6
      %s296 = sadd.s32 %s295, %s22
      %s297 = sadd.s32 %s296, 1
      %p298 = scmp.lt.s32.totalorder %s297, 11
      %s299 = scalar_select %p298, %s297, 11
      %s300 = smul.addr %s299, 72
      %s301 = smul.addr %s300, 4
      %s302 = scalar_lea.vmem %s1, %s301
      %p303 = pneg %p86
      %p304 = pneg %p83
      %s305 = smul.u32 %s21, 6
      %s306 = sadd.s32 %s305, %s22
      %s307 = sadd.s32 %s306, 2
      %p308 = scmp.lt.s32.totalorder %s307, 11
      %s309 = scalar_select %p308, %s307, 11
      %s310 = smul.addr %s309, 72
      %s311 = smul.addr %s310, 4
      %s312 = scalar_lea.vmem %s2, %s311
      %p313 = pneg %p118
      %p314 = pneg %p115
      %p315 = pneg %p139
      %p316 = pneg %p136
      %p317 = pneg %p160
      %p318 = pneg %p157
      %p319 = pneg %p181
      %p320 = pneg %p178
      %p321 = pneg %p211
      %p322 = pneg %p208
      %s323 = smul.u32 %s21, 4
      %s324 = sadd.s32 %s323, %s22
      %p325 = scmp.lt.s32.totalorder %s324, 7
      %s326 = scalar_select %p325, %s324, 7
      %s327 = smul.addr %s326, 4
      %s328 = scalar_lea.vmem %s6, %s327
      %s329 = smul.u32 %s21, 6
      %s330 = sadd.s32 %s329, %s22
      %p331 = scmp.lt.s32.totalorder %s330, 11
      %s332 = scalar_select %p331, %s330, 11
      %s333 = smul.addr %s332, 72
      %s334 = smul.addr %s333, 4
      %s335 = scalar_lea.vmem %s0, %s334
      %s336 = smul.u32 %s21, 6
      %s337 = sadd.s32 %s336, %s22
      %s338 = smul.u32 %s21, 6
      %s339 = sadd.s32 %s338, %s22
      %s340 = sadd.s32 %s339, 1
      %p341 = scmp.lt.s32.totalorder %s340, 11
      %s342 = scalar_select %p341, %s340, 11
      %s343 = smul.addr %s342, 72
      %s344 = smul.addr %s343, 4
      %s345 = scalar_lea.vmem %s1, %s344
      %s346 = smul.u32 %s21, 6
      %s347 = sadd.s32 %s346, %s22
      %s348 = sadd.s32 %s347, 1
      %s349 = smul.u32 %s21, 6
      %s350 = sadd.s32 %s349, %s22
      %s351 = sadd.s32 %s350, 2
      %p352 = scmp.lt.s32.totalorder %s351, 11
      %s353 = scalar_select %p352, %s351, 11
      %s354 = smul.addr %s353, 72
      %s355 = smul.addr %s354, 4
      %s356 = scalar_lea.vmem %s2, %s355
      %s357 = smul.u32 %s21, 6
      %s358 = sadd.s32 %s357, %s22
      %s359 = sadd.s32 %s358, 2
      %s360 = smul.u32 %s21, 4
      %s361 = sadd.s32 %s360, %s22
      %p362 = scmp.lt.s32.totalorder %s361, 7
      %s363 = scalar_select %p362, %s361, 7
      %s364 = smul.addr %s363, 4
      %s365 = scalar_lea.vmem %s6, %s364
      %s366 = smul.u32 %s21, 4
      %s367 = sadd.s32 %s366, %s22
      %v369 = vld [vmem:[%s335] sm:$0xf]
      %v370 = vld [vmem:[%s335 + $0x8] sm:$0xf]
      %v371 = vld [vmem:[%s335 + $0x10] sm:$0xf]
      %v372 = vld [vmem:[%s335 + $0x18] sm:$0xf]
      %v373 = vld [vmem:[%s335 + $0x20] sm:$0xf]
      %v374 = vld [vmem:[%s335 + $0x28] sm:$0xf]
      %v375 = vld [vmem:[%s335 + $0x30] sm:$0xf]
      %v376 = vld [vmem:[%s335 + $0x38] sm:$0xf]
      %s377 = scalar_lea.vmem %s335, 72
      %v378 = vld [vmem:[%s377] sm:$0xf]
      %v379 = vld [vmem:[%s377 + $0x8] sm:$0xf]
      %v380 = vld [vmem:[%s377 + $0x10] sm:$0xf]
      %v381 = vld [vmem:[%s377 + $0x18] sm:$0xf]
      %v382 = vld [vmem:[%s377 + $0x20] sm:$0xf]
      %v383 = vld [vmem:[%s377 + $0x28] sm:$0xf]
      %v384 = vld [vmem:[%s377 + $0x30] sm:$0xf]
      %v385 = vld [vmem:[%s377 + $0x38] sm:$0xf]
      %v386 = vld [vmem:[%s335 + $0x4] sm:$0x1]
      %v387 = vld [vmem:[%s335 + $0xc] sm:$0x1]
      %v388 = vld [vmem:[%s335 + $0x14] sm:$0x1]
      %v389 = vld [vmem:[%s335 + $0x1c] sm:$0x1]
      %v390 = vld [vmem:[%s335 + $0x24] sm:$0x1]
      %v391 = vld [vmem:[%s335 + $0x2c] sm:$0x1]
      %v392 = vld [vmem:[%s335 + $0x34] sm:$0x1]
      %v393 = vld [vmem:[%s335 + $0x3c] sm:$0x1]
      %s394 = scalar_lea.vmem %s335, 144
      %v395 = vld [vmem:[%s394] sm:$0xf]
      %v396 = vld [vmem:[%s394 + $0x8] sm:$0xf]
      %v397 = vld [vmem:[%s394 + $0x10] sm:$0xf]
      %v398 = vld [vmem:[%s394 + $0x18] sm:$0xf]
      %v399 = vld [vmem:[%s394 + $0x20] sm:$0xf]
      %v400 = vld [vmem:[%s394 + $0x28] sm:$0xf]
      %v401 = vld [vmem:[%s394 + $0x30] sm:$0xf]
      %v402 = vld [vmem:[%s394 + $0x38] sm:$0xf]
      %s403 = scalar_lea.vmem %s335, 216
      %v404 = vld [vmem:[%s403] sm:$0xf]
      %v405 = vld [vmem:[%s403 + $0x8] sm:$0xf]
      %v406 = vld [vmem:[%s403 + $0x10] sm:$0xf]
      %v407 = vld [vmem:[%s403 + $0x18] sm:$0xf]
      %v408 = vld [vmem:[%s403 + $0x20] sm:$0xf]
      %v409 = vld [vmem:[%s403 + $0x28] sm:$0xf]
      %v410 = vld [vmem:[%s403 + $0x30] sm:$0xf]
      %v411 = vld [vmem:[%s403 + $0x38] sm:$0xf]
      %v412 = vld [vmem:[%s394 + $0x4] sm:$0x1]
      %v413 = vld [vmem:[%s394 + $0xc] sm:$0x1]
      %v414 = vld [vmem:[%s394 + $0x14] sm:$0x1]
      %v415 = vld [vmem:[%s394 + $0x1c] sm:$0x1]
      %v416 = vld [vmem:[%s394 + $0x24] sm:$0x1]
      %v417 = vld [vmem:[%s394 + $0x2c] sm:$0x1]
      %v418 = vld [vmem:[%s394 + $0x34] sm:$0x1]
      %v419 = vld [vmem:[%s394 + $0x3c] sm:$0x1]
      %s420 = scalar_lea.vmem %s335, 8
      %v421 = vld [vmem:[%s420] sm:$0xf]
      %v422 = vld [vmem:[%s420 + $0x8] sm:$0xf]
      %v423 = vld [vmem:[%s420 + $0x10] sm:$0xf]
      %v424 = vld [vmem:[%s420 + $0x18] sm:$0xf]
      %v425 = vld [vmem:[%s420 + $0x20] sm:$0xf]
      %v426 = vld [vmem:[%s420 + $0x28] sm:$0xf]
      %v427 = vld [vmem:[%s420 + $0x30] sm:$0xf]
      %v428 = vld [vmem:[%s420 + $0x38] sm:$0xf]
      %s429 = scalar_lea.vmem %s335, 80
      %v430 = vld [vmem:[%s429] sm:$0xf]
      %v431 = vld [vmem:[%s429 + $0x8] sm:$0xf]
      %v432 = vld [vmem:[%s429 + $0x10] sm:$0xf]
      %v433 = vld [vmem:[%s429 + $0x18] sm:$0xf]
      %v434 = vld [vmem:[%s429 + $0x20] sm:$0xf]
      %v435 = vld [vmem:[%s429 + $0x28] sm:$0xf]
      %v436 = vld [vmem:[%s429 + $0x30] sm:$0xf]
      %v437 = vld [vmem:[%s429 + $0x38] sm:$0xf]
      %v438 = vld [vmem:[%s420 + $0x4] sm:$0x1]
      %v439 = vld [vmem:[%s420 + $0xc] sm:$0x1]
      %v440 = vld [vmem:[%s420 + $0x14] sm:$0x1]
      %v441 = vld [vmem:[%s420 + $0x1c] sm:$0x1]
      %v442 = vld [vmem:[%s420 + $0x24] sm:$0x1]
      %v443 = vld [vmem:[%s420 + $0x2c] sm:$0x1]
      %v444 = vld [vmem:[%s420 + $0x34] sm:$0x1]
      %v445 = vld [vmem:[%s420 + $0x3c] sm:$0x1]
      %v446 = vld [vmem:[%s345] sm:$0xf]
      %v447 = vld [vmem:[%s345 + $0x8] sm:$0xf]
      %v448 = vld [vmem:[%s345 + $0x10] sm:$0xf]
      %v449 = vld [vmem:[%s345 + $0x18] sm:$0xf]
      %v450 = vld [vmem:[%s345 + $0x20] sm:$0xf]
      %v451 = vld [vmem:[%s345 + $0x28] sm:$0xf]
      %v452 = vld [vmem:[%s345 + $0x30] sm:$0xf]
      %v453 = vld [vmem:[%s345 + $0x38] sm:$0xf]
      %s454 = scalar_lea.vmem %s345, 72
      %v455 = vld [vmem:[%s454] sm:$0xf]
      %v456 = vld [vmem:[%s454 + $0x8] sm:$0xf]
      %v457 = vld [vmem:[%s454 + $0x10] sm:$0xf]
      %v458 = vld [vmem:[%s454 + $0x18] sm:$0xf]
      %v459 = vld [vmem:[%s454 + $0x20] sm:$0xf]
      %v460 = vld [vmem:[%s454 + $0x28] sm:$0xf]
      %v461 = vld [vmem:[%s454 + $0x30] sm:$0xf]
      %v462 = vld [vmem:[%s454 + $0x38] sm:$0xf]
      %v463 = vld [vmem:[%s345 + $0x4] sm:$0x1]
      %v464 = vld [vmem:[%s345 + $0xc] sm:$0x1]
      %v465 = vld [vmem:[%s345 + $0x14] sm:$0x1]
      %v466 = vld [vmem:[%s345 + $0x1c] sm:$0x1]
      %v467 = vld [vmem:[%s345 + $0x24] sm:$0x1]
      %v468 = vld [vmem:[%s345 + $0x2c] sm:$0x1]
      %v469 = vld [vmem:[%s345 + $0x34] sm:$0x1]
      %v470 = vld [vmem:[%s345 + $0x3c] sm:$0x1]
      %s471 = scalar_lea.vmem %s345, 144
      %v472 = vld [vmem:[%s471] sm:$0xf]
      %v473 = vld [vmem:[%s471 + $0x8] sm:$0xf]
      %v474 = vld [vmem:[%s471 + $0x10] sm:$0xf]
      %v475 = vld [vmem:[%s471 + $0x18] sm:$0xf]
      %v476 = vld [vmem:[%s471 + $0x20] sm:$0xf]
      %v477 = vld [vmem:[%s471 + $0x28] sm:$0xf]
      %v478 = vld [vmem:[%s471 + $0x30] sm:$0xf]
      %v479 = vld [vmem:[%s471 + $0x38] sm:$0xf]
      %s480 = scalar_lea.vmem %s345, 216
      %v481 = vld [vmem:[%s480] sm:$0xf]
      %v482 = vld [vmem:[%s480 + $0x8] sm:$0xf]
      %v483 = vld [vmem:[%s480 + $0x10] sm:$0xf]
      %v484 = vld [vmem:[%s480 + $0x18] sm:$0xf]
      %v485 = vld [vmem:[%s480 + $0x20] sm:$0xf]
      %v486 = vld [vmem:[%s480 + $0x28] sm:$0xf]
      %v487 = vld [vmem:[%s480 + $0x30] sm:$0xf]
      %v488 = vld [vmem:[%s480 + $0x38] sm:$0xf]
      %v489 = vld [vmem:[%s471 + $0x4] sm:$0x1]
      %v490 = vld [vmem:[%s471 + $0xc] sm:$0x1]
      %v491 = vld [vmem:[%s471 + $0x14] sm:$0x1]
      %v492 = vld [vmem:[%s471 + $0x1c] sm:$0x1]
      %v493 = vld [vmem:[%s471 + $0x24] sm:$0x1]
      %v494 = vld [vmem:[%s471 + $0x2c] sm:$0x1]
      %v495 = vld [vmem:[%s471 + $0x34] sm:$0x1]
      %v496 = vld [vmem:[%s471 + $0x3c] sm:$0x1]
      %s497 = scalar_lea.vmem %s345, 8
      %v498 = vld [vmem:[%s497] sm:$0xf]
      %v499 = vld [vmem:[%s497 + $0x8] sm:$0xf]
      %v500 = vld [vmem:[%s497 + $0x10] sm:$0xf]
      %v501 = vld [vmem:[%s497 + $0x18] sm:$0xf]
      %v502 = vld [vmem:[%s497 + $0x20] sm:$0xf]
      %v503 = vld [vmem:[%s497 + $0x28] sm:$0xf]
      %v504 = vld [vmem:[%s497 + $0x30] sm:$0xf]
      %v505 = vld [vmem:[%s497 + $0x38] sm:$0xf]
      %s506 = scalar_lea.vmem %s345, 80
      %v507 = vld [vmem:[%s506] sm:$0xf]
      %v508 = vld [vmem:[%s506 + $0x8] sm:$0xf]
      %v509 = vld [vmem:[%s506 + $0x10] sm:$0xf]
      %v510 = vld [vmem:[%s506 + $0x18] sm:$0xf]
      %v511 = vld [vmem:[%s506 + $0x20] sm:$0xf]
      %v512 = vld [vmem:[%s506 + $0x28] sm:$0xf]
      %v513 = vld [vmem:[%s506 + $0x30] sm:$0xf]
      %v514 = vld [vmem:[%s506 + $0x38] sm:$0xf]
      %v515 = vld [vmem:[%s497 + $0x4] sm:$0x1]
      %v516 = vld [vmem:[%s497 + $0xc] sm:$0x1]
      %v517 = vld [vmem:[%s497 + $0x14] sm:$0x1]
      %v518 = vld [vmem:[%s497 + $0x1c] sm:$0x1]
      %v519 = vld [vmem:[%s497 + $0x24] sm:$0x1]
      %v520 = vld [vmem:[%s497 + $0x2c] sm:$0x1]
      %v521 = vld [vmem:[%s497 + $0x34] sm:$0x1]
      %v522 = vld [vmem:[%s497 + $0x3c] sm:$0x1]
      %v523 = vld [vmem:[%s356] sm:$0xf]
      %v524 = vld [vmem:[%s356 + $0x8] sm:$0xf]
      %v525 = vld [vmem:[%s356 + $0x10] sm:$0xf]
      %v526 = vld [vmem:[%s356 + $0x18] sm:$0xf]
      %v527 = vld [vmem:[%s356 + $0x20] sm:$0xf]
      %v528 = vld [vmem:[%s356 + $0x28] sm:$0xf]
      %v529 = vld [vmem:[%s356 + $0x30] sm:$0xf]
      %v530 = vld [vmem:[%s356 + $0x38] sm:$0xf]
      %s531 = scalar_lea.vmem %s356, 72
      %v532 = vld [vmem:[%s531] sm:$0xf]
      %v533 = vld [vmem:[%s531 + $0x8] sm:$0xf]
      %v534 = vld [vmem:[%s531 + $0x10] sm:$0xf]
      %v535 = vld [vmem:[%s531 + $0x18] sm:$0xf]
      %v536 = vld [vmem:[%s531 + $0x20] sm:$0xf]
      %v537 = vld [vmem:[%s531 + $0x28] sm:$0xf]
      %v538 = vld [vmem:[%s531 + $0x30] sm:$0xf]
      %v539 = vld [vmem:[%s531 + $0x38] sm:$0xf]
      %v540 = vld [vmem:[%s356 + $0x4] sm:$0x1]
      %v541 = vld [vmem:[%s356 + $0xc] sm:$0x1]
      %v542 = vld [vmem:[%s356 + $0x14] sm:$0x1]
      %v543 = vld [vmem:[%s356 + $0x1c] sm:$0x1]
      %v544 = vld [vmem:[%s356 + $0x24] sm:$0x1]
      %v545 = vld [vmem:[%s356 + $0x2c] sm:$0x1]
      %v546 = vld [vmem:[%s356 + $0x34] sm:$0x1]
      %v547 = vld [vmem:[%s356 + $0x3c] sm:$0x1]
      %s548 = scalar_lea.vmem %s356, 144
      %v549 = vld [vmem:[%s548] sm:$0xf]
      %v550 = vld [vmem:[%s548 + $0x8] sm:$0xf]
      %v551 = vld [vmem:[%s548 + $0x10] sm:$0xf]
      %v552 = vld [vmem:[%s548 + $0x18] sm:$0xf]
      %v553 = vld [vmem:[%s548 + $0x20] sm:$0xf]
      %v554 = vld [vmem:[%s548 + $0x28] sm:$0xf]
      %v555 = vld [vmem:[%s548 + $0x30] sm:$0xf]
      %v556 = vld [vmem:[%s548 + $0x38] sm:$0xf]
      %s557 = scalar_lea.vmem %s356, 216
      %v558 = vld [vmem:[%s557] sm:$0xf]
      %v559 = vld [vmem:[%s557 + $0x8] sm:$0xf]
      %v560 = vld [vmem:[%s557 + $0x10] sm:$0xf]
      %v561 = vld [vmem:[%s557 + $0x18] sm:$0xf]
      %v562 = vld [vmem:[%s557 + $0x20] sm:$0xf]
      %v563 = vld [vmem:[%s557 + $0x28] sm:$0xf]
      %v564 = vld [vmem:[%s557 + $0x30] sm:$0xf]
      %v565 = vld [vmem:[%s557 + $0x38] sm:$0xf]
      %v566 = vld [vmem:[%s548 + $0x4] sm:$0x1]
      %v567 = vld [vmem:[%s548 + $0xc] sm:$0x1]
      %v568 = vld [vmem:[%s548 + $0x14] sm:$0x1]
      %v569 = vld [vmem:[%s548 + $0x1c] sm:$0x1]
      %v570 = vld [vmem:[%s548 + $0x24] sm:$0x1]
      %v571 = vld [vmem:[%s548 + $0x2c] sm:$0x1]
      %v572 = vld [vmem:[%s548 + $0x34] sm:$0x1]
      %v573 = vld [vmem:[%s548 + $0x3c] sm:$0x1]
      %s574 = scalar_lea.vmem %s356, 8
      %v575 = vld [vmem:[%s574] sm:$0xf]
      %v576 = vld [vmem:[%s574 + $0x8] sm:$0xf]
      %v577 = vld [vmem:[%s574 + $0x10] sm:$0xf]
      %v578 = vld [vmem:[%s574 + $0x18] sm:$0xf]
      %v579 = vld [vmem:[%s574 + $0x20] sm:$0xf]
      %v580 = vld [vmem:[%s574 + $0x28] sm:$0xf]
      %v581 = vld [vmem:[%s574 + $0x30] sm:$0xf]
      %v582 = vld [vmem:[%s574 + $0x38] sm:$0xf]
      %s583 = scalar_lea.vmem %s356, 80
      %v584 = vld [vmem:[%s583] sm:$0xf]
      %v585 = vld [vmem:[%s583 + $0x8] sm:$0xf]
      %v586 = vld [vmem:[%s583 + $0x10] sm:$0xf]
      %v587 = vld [vmem:[%s583 + $0x18] sm:$0xf]
      %v588 = vld [vmem:[%s583 + $0x20] sm:$0xf]
      %v589 = vld [vmem:[%s583 + $0x28] sm:$0xf]
      %v590 = vld [vmem:[%s583 + $0x30] sm:$0xf]
      %v591 = vld [vmem:[%s583 + $0x38] sm:$0xf]
      %v592 = vld [vmem:[%s574 + $0x4] sm:$0x1]
      %v593 = vld [vmem:[%s574 + $0xc] sm:$0x1]
      %v594 = vld [vmem:[%s574 + $0x14] sm:$0x1]
      %v595 = vld [vmem:[%s574 + $0x1c] sm:$0x1]
      %v596 = vld [vmem:[%s574 + $0x24] sm:$0x1]
      %v597 = vld [vmem:[%s574 + $0x2c] sm:$0x1]
      %v598 = vld [vmem:[%s574 + $0x34] sm:$0x1]
      %v599 = vld [vmem:[%s574 + $0x3c] sm:$0x1]
      %v608 = vunpack.c.l.b16 %v378
      %v609 = vunpack.c.l.b16 %v379
      %v610 = vunpack.c.l.b16 %v380
      %v611 = vunpack.c.l.b16 %v381
      %v612 = vunpack.c.l.b16 %v382
      %v613 = vunpack.c.l.b16 %v383
      %v614 = vunpack.c.l.b16 %v384
      %v615 = vunpack.c.l.b16 %v385
      %v616 = vpack.c.b16 %v608, %v608
      %v617 = vpack.c.b16 %v609, %v609
      %v618 = vpack.c.b16 %v610, %v610
      %v619 = vpack.c.b16 %v611, %v611
      %v620 = vpack.c.b16 %v612, %v612
      %v621 = vpack.c.b16 %v613, %v613
      %v622 = vpack.c.b16 %v614, %v614
      %v623 = vpack.c.b16 %v615, %v615
      %624 = vrot.lane.b32.xlu0 %v616, 3
      %v625 = vpop.permute.xlu0 %624
      %626 = vrot.lane.b32.xlu0 %v617, 3
      %v627 = vpop.permute.xlu0 %626
      %628 = vrot.lane.b32.xlu0 %v618, 3
      %v629 = vpop.permute.xlu0 %628
      %630 = vrot.lane.b32.xlu0 %v619, 3
      %v631 = vpop.permute.xlu0 %630
      %632 = vrot.lane.b32.xlu0 %v620, 3
      %v633 = vpop.permute.xlu0 %632
      %634 = vrot.lane.b32.xlu0 %v621, 3
      %v635 = vpop.permute.xlu0 %634
      %636 = vrot.lane.b32.xlu0 %v622, 3
      %v637 = vpop.permute.xlu0 %636
      %638 = vrot.lane.b32.xlu0 %v623, 3
      %v639 = vpop.permute.xlu0 %638
      %v656 = vunpack.c.l.b16 %v369
      %v657 = vunpack.c.l.b16 %v386
      %v658 = vunpack.c.l.b16 %v370
      %v659 = vunpack.c.l.b16 %v387
      %v660 = vunpack.c.l.b16 %v371
      %v661 = vunpack.c.l.b16 %v388
      %v662 = vunpack.c.l.b16 %v372
      %v663 = vunpack.c.l.b16 %v389
      %v664 = vunpack.c.l.b16 %v373
      %v665 = vunpack.c.l.b16 %v390
      %v666 = vunpack.c.l.b16 %v374
      %v667 = vunpack.c.l.b16 %v391
      %v668 = vunpack.c.l.b16 %v375
      %v669 = vunpack.c.l.b16 %v392
      %v670 = vunpack.c.l.b16 %v376
      %v671 = vunpack.c.l.b16 %v393
      %v672 = vpack.c.b16 %v657, %v656
      %v673 = vpack.c.b16 %v659, %v658
      %v674 = vpack.c.b16 %v661, %v660
      %v675 = vpack.c.b16 %v663, %v662
      %v676 = vpack.c.b16 %v665, %v664
      %v677 = vpack.c.b16 %v667, %v666
      %v678 = vpack.c.b16 %v669, %v668
      %v679 = vpack.c.b16 %v671, %v670
      %v681 = vshrl.u32 %v672, 16
      %v683 = vshll.u32 %v672, 16
      %v685 = vrot.slane %v683, 1
      %v686 = vor.u32 %v681, %v685
      %v688 = vshrl.u32 %v673, 16
      %v690 = vshll.u32 %v673, 16
      %v692 = vrot.slane %v690, 1
      %v693 = vor.u32 %v688, %v692
      %v695 = vshrl.u32 %v674, 16
      %v697 = vshll.u32 %v674, 16
      %v699 = vrot.slane %v697, 1
      %v700 = vor.u32 %v695, %v699
      %v702 = vshrl.u32 %v675, 16
      %v704 = vshll.u32 %v675, 16
      %v706 = vrot.slane %v704, 1
      %v707 = vor.u32 %v702, %v706
      %v709 = vshrl.u32 %v676, 16
      %v711 = vshll.u32 %v676, 16
      %v713 = vrot.slane %v711, 1
      %v714 = vor.u32 %v709, %v713
      %v716 = vshrl.u32 %v677, 16
      %v718 = vshll.u32 %v677, 16
      %v720 = vrot.slane %v718, 1
      %v721 = vor.u32 %v716, %v720
      %v723 = vshrl.u32 %v678, 16
      %v725 = vshll.u32 %v678, 16
      %v727 = vrot.slane %v725, 1
      %v728 = vor.u32 %v723, %v727
      %v730 = vshrl.u32 %v679, 16
      %v732 = vshll.u32 %v679, 16
      %v734 = vrot.slane %v732, 1
      %v735 = vor.u32 %v730, %v734
      %736 = vrot.lane.b32.xlu0 %v686, 6
      %v737 = vpop.permute.xlu0 %736
      %738 = vrot.lane.b32.xlu0 %v693, 6
      %v739 = vpop.permute.xlu0 %738
      %740 = vrot.lane.b32.xlu0 %v700, 6
      %v741 = vpop.permute.xlu0 %740
      %742 = vrot.lane.b32.xlu0 %v707, 6
      %v743 = vpop.permute.xlu0 %742
      %744 = vrot.lane.b32.xlu0 %v714, 6
      %v745 = vpop.permute.xlu0 %744
      %746 = vrot.lane.b32.xlu0 %v721, 6
      %v747 = vpop.permute.xlu0 %746
      %748 = vrot.lane.b32.xlu0 %v728, 6
      %v749 = vpop.permute.xlu0 %748
      %750 = vrot.lane.b32.xlu0 %v735, 6
      %v751 = vpop.permute.xlu0 %750
      %v760 = vunpack.c.l.b16 %v395
      %v761 = vunpack.c.l.b16 %v396
      %v762 = vunpack.c.l.b16 %v397
      %v763 = vunpack.c.l.b16 %v398
      %v764 = vunpack.c.l.b16 %v399
      %v765 = vunpack.c.l.b16 %v400
      %v766 = vunpack.c.l.b16 %v401
      %v767 = vunpack.c.l.b16 %v402
      %v768 = vpack.c.b16 %v760, %v760
      %v769 = vpack.c.b16 %v761, %v761
      %v770 = vpack.c.b16 %v762, %v762
      %v771 = vpack.c.b16 %v763, %v763
      %v772 = vpack.c.b16 %v764, %v764
      %v773 = vpack.c.b16 %v765, %v765
      %v774 = vpack.c.b16 %v766, %v766
      %v775 = vpack.c.b16 %v767, %v767
      %776 = vrot.lane.b32.xlu0 %v768, 9
      %v777 = vpop.permute.xlu0 %776
      %778 = vrot.lane.b32.xlu0 %v769, 9
      %v779 = vpop.permute.xlu0 %778
      %780 = vrot.lane.b32.xlu0 %v770, 9
      %v781 = vpop.permute.xlu0 %780
      %782 = vrot.lane.b32.xlu0 %v771, 9
      %v783 = vpop.permute.xlu0 %782
      %784 = vrot.lane.b32.xlu0 %v772, 9
      %v785 = vpop.permute.xlu0 %784
      %786 = vrot.lane.b32.xlu0 %v773, 9
      %v787 = vpop.permute.xlu0 %786
      %788 = vrot.lane.b32.xlu0 %v774, 9
      %v789 = vpop.permute.xlu0 %788
      %790 = vrot.lane.b32.xlu0 %v775, 9
      %v791 = vpop.permute.xlu0 %790
      %v800 = vunpack.c.l.b16 %v404
      %v801 = vunpack.c.l.b16 %v405
      %v802 = vunpack.c.l.b16 %v406
      %v803 = vunpack.c.l.b16 %v407
      %v804 = vunpack.c.l.b16 %v408
      %v805 = vunpack.c.l.b16 %v409
      %v806 = vunpack.c.l.b16 %v410
      %v807 = vunpack.c.l.b16 %v411
      %v808 = vpack.c.b16 %v800, %v800
      %v809 = vpack.c.b16 %v801, %v801
      %v810 = vpack.c.b16 %v802, %v802
      %v811 = vpack.c.b16 %v803, %v803
      %v812 = vpack.c.b16 %v804, %v804
      %v813 = vpack.c.b16 %v805, %v805
      %v814 = vpack.c.b16 %v806, %v806
      %v815 = vpack.c.b16 %v807, %v807
      %816 = vrot.lane.b32.xlu0 %v808, 12
      %v817 = vpop.permute.xlu0 %816
      %818 = vrot.lane.b32.xlu0 %v809, 12
      %v819 = vpop.permute.xlu0 %818
      %820 = vrot.lane.b32.xlu0 %v810, 12
      %v821 = vpop.permute.xlu0 %820
      %822 = vrot.lane.b32.xlu0 %v811, 12
      %v823 = vpop.permute.xlu0 %822
      %824 = vrot.lane.b32.xlu0 %v812, 12
      %v825 = vpop.permute.xlu0 %824
      %826 = vrot.lane.b32.xlu0 %v813, 12
      %v827 = vpop.permute.xlu0 %826
      %828 = vrot.lane.b32.xlu0 %v814, 12
      %v829 = vpop.permute.xlu0 %828
      %830 = vrot.lane.b32.xlu0 %v815, 12
      %v831 = vpop.permute.xlu0 %830
      %v840 = vunpack.c.l.b16 %v412
      %v841 = vunpack.c.l.b16 %v413
      %v842 = vunpack.c.l.b16 %v414
      %v843 = vunpack.c.l.b16 %v415
      %v844 = vunpack.c.l.b16 %v416
      %v845 = vunpack.c.l.b16 %v417
      %v846 = vunpack.c.l.b16 %v418
      %v847 = vunpack.c.l.b16 %v419
      %v848 = vpack.c.b16 %v840, %v760
      %v849 = vpack.c.b16 %v841, %v761
      %v850 = vpack.c.b16 %v842, %v762
      %v851 = vpack.c.b16 %v843, %v763
      %v852 = vpack.c.b16 %v844, %v764
      %v853 = vpack.c.b16 %v845, %v765
      %v854 = vpack.c.b16 %v846, %v766
      %v855 = vpack.c.b16 %v847, %v767
      %v857 = vshrl.u32 %v848, 16
      %v859 = vshll.u32 %v848, 16
      %v861 = vrot.slane %v859, 1
      %v862 = vor.u32 %v857, %v861
      %v864 = vshrl.u32 %v849, 16
      %v866 = vshll.u32 %v849, 16
      %v868 = vrot.slane %v866, 1
      %v869 = vor.u32 %v864, %v868
      %v871 = vshrl.u32 %v850, 16
      %v873 = vshll.u32 %v850, 16
      %v875 = vrot.slane %v873, 1
      %v876 = vor.u32 %v871, %v875
      %v878 = vshrl.u32 %v851, 16
      %v880 = vshll.u32 %v851, 16
      %v882 = vrot.slane %v880, 1
      %v883 = vor.u32 %v878, %v882
      %v885 = vshrl.u32 %v852, 16
      %v887 = vshll.u32 %v852, 16
      %v889 = vrot.slane %v887, 1
      %v890 = vor.u32 %v885, %v889
      %v892 = vshrl.u32 %v853, 16
      %v894 = vshll.u32 %v853, 16
      %v896 = vrot.slane %v894, 1
      %v897 = vor.u32 %v892, %v896
      %v899 = vshrl.u32 %v854, 16
      %v901 = vshll.u32 %v854, 16
      %v903 = vrot.slane %v901, 1
      %v904 = vor.u32 %v899, %v903
      %v906 = vshrl.u32 %v855, 16
      %v908 = vshll.u32 %v855, 16
      %v910 = vrot.slane %v908, 1
      %v911 = vor.u32 %v906, %v910
      %912 = vrot.lane.b32.xlu0 %v862, 15
      %v913 = vpop.permute.xlu0 %912
      %914 = vrot.lane.b32.xlu0 %v869, 15
      %v915 = vpop.permute.xlu0 %914
      %916 = vrot.lane.b32.xlu0 %v876, 15
      %v917 = vpop.permute.xlu0 %916
      %918 = vrot.lane.b32.xlu0 %v883, 15
      %v919 = vpop.permute.xlu0 %918
      %920 = vrot.lane.b32.xlu0 %v890, 15
      %v921 = vpop.permute.xlu0 %920
      %922 = vrot.lane.b32.xlu0 %v897, 15
      %v923 = vpop.permute.xlu0 %922
      %924 = vrot.lane.b32.xlu0 %v904, 15
      %v925 = vpop.permute.xlu0 %924
      %926 = vrot.lane.b32.xlu0 %v911, 15
      %v927 = vpop.permute.xlu0 %926
      %v936 = vunpack.c.l.b16 %v421
      %v937 = vunpack.c.l.b16 %v422
      %v938 = vunpack.c.l.b16 %v423
      %v939 = vunpack.c.l.b16 %v424
      %v940 = vunpack.c.l.b16 %v425
      %v941 = vunpack.c.l.b16 %v426
      %v942 = vunpack.c.l.b16 %v427
      %v943 = vunpack.c.l.b16 %v428
      %v944 = vpack.c.b16 %v936, %v936
      %v945 = vpack.c.b16 %v937, %v937
      %v946 = vpack.c.b16 %v938, %v938
      %v947 = vpack.c.b16 %v939, %v939
      %v948 = vpack.c.b16 %v940, %v940
      %v949 = vpack.c.b16 %v941, %v941
      %v950 = vpack.c.b16 %v942, %v942
      %v951 = vpack.c.b16 %v943, %v943
      %952 = vrot.lane.b32.xlu0 %v944, 18
      %v953 = vpop.permute.xlu0 %952
      %954 = vrot.lane.b32.xlu0 %v945, 18
      %v955 = vpop.permute.xlu0 %954
      %956 = vrot.lane.b32.xlu0 %v946, 18
      %v957 = vpop.permute.xlu0 %956
      %958 = vrot.lane.b32.xlu0 %v947, 18
      %v959 = vpop.permute.xlu0 %958
      %960 = vrot.lane.b32.xlu0 %v948, 18
      %v961 = vpop.permute.xlu0 %960
      %962 = vrot.lane.b32.xlu0 %v949, 18
      %v963 = vpop.permute.xlu0 %962
      %964 = vrot.lane.b32.xlu0 %v950, 18
      %v965 = vpop.permute.xlu0 %964
      %966 = vrot.lane.b32.xlu0 %v951, 18
      %v967 = vpop.permute.xlu0 %966
      %v976 = vunpack.c.l.b16 %v430
      %v977 = vunpack.c.l.b16 %v431
      %v978 = vunpack.c.l.b16 %v432
      %v979 = vunpack.c.l.b16 %v433
      %v980 = vunpack.c.l.b16 %v434
      %v981 = vunpack.c.l.b16 %v435
      %v982 = vunpack.c.l.b16 %v436
      %v983 = vunpack.c.l.b16 %v437
      %v984 = vpack.c.b16 %v976, %v976
      %v985 = vpack.c.b16 %v977, %v977
      %v986 = vpack.c.b16 %v978, %v978
      %v987 = vpack.c.b16 %v979, %v979
      %v988 = vpack.c.b16 %v980, %v980
      %v989 = vpack.c.b16 %v981, %v981
      %v990 = vpack.c.b16 %v982, %v982
      %v991 = vpack.c.b16 %v983, %v983
      %992 = vrot.lane.b32.xlu0 %v984, 21
      %v993 = vpop.permute.xlu0 %992
      %994 = vrot.lane.b32.xlu0 %v985, 21
      %v995 = vpop.permute.xlu0 %994
      %996 = vrot.lane.b32.xlu0 %v986, 21
      %v997 = vpop.permute.xlu0 %996
      %998 = vrot.lane.b32.xlu0 %v987, 21
      %v999 = vpop.permute.xlu0 %998
      %1000 = vrot.lane.b32.xlu0 %v988, 21
      %v1001 = vpop.permute.xlu0 %1000
      %1002 = vrot.lane.b32.xlu0 %v989, 21
      %v1003 = vpop.permute.xlu0 %1002
      %1004 = vrot.lane.b32.xlu0 %v990, 21
      %v1005 = vpop.permute.xlu0 %1004
      %1006 = vrot.lane.b32.xlu0 %v991, 21
      %v1007 = vpop.permute.xlu0 %1006
      %v1016 = vunpack.c.l.b16 %v438
      %v1017 = vunpack.c.l.b16 %v439
      %v1018 = vunpack.c.l.b16 %v440
      %v1019 = vunpack.c.l.b16 %v441
      %v1020 = vunpack.c.l.b16 %v442
      %v1021 = vunpack.c.l.b16 %v443
      %v1022 = vunpack.c.l.b16 %v444
      %v1023 = vunpack.c.l.b16 %v445
      %v1024 = vpack.c.b16 %v1016, %v936
      %v1025 = vpack.c.b16 %v1017, %v937
      %v1026 = vpack.c.b16 %v1018, %v938
      %v1027 = vpack.c.b16 %v1019, %v939
      %v1028 = vpack.c.b16 %v1020, %v940
      %v1029 = vpack.c.b16 %v1021, %v941
      %v1030 = vpack.c.b16 %v1022, %v942
      %v1031 = vpack.c.b16 %v1023, %v943
      %v1033 = vshrl.u32 %v1024, 16
      %v1035 = vshll.u32 %v1024, 16
      %v1037 = vrot.slane %v1035, 1
      %v1038 = vor.u32 %v1033, %v1037
      %v1040 = vshrl.u32 %v1025, 16
      %v1042 = vshll.u32 %v1025, 16
      %v1044 = vrot.slane %v1042, 1
      %v1045 = vor.u32 %v1040, %v1044
      %v1047 = vshrl.u32 %v1026, 16
      %v1049 = vshll.u32 %v1026, 16
      %v1051 = vrot.slane %v1049, 1
      %v1052 = vor.u32 %v1047, %v1051
      %v1054 = vshrl.u32 %v1027, 16
      %v1056 = vshll.u32 %v1027, 16
      %v1058 = vrot.slane %v1056, 1
      %v1059 = vor.u32 %v1054, %v1058
      %v1061 = vshrl.u32 %v1028, 16
      %v1063 = vshll.u32 %v1028, 16
      %v1065 = vrot.slane %v1063, 1
      %v1066 = vor.u32 %v1061, %v1065
      %v1068 = vshrl.u32 %v1029, 16
      %v1070 = vshll.u32 %v1029, 16
      %v1072 = vrot.slane %v1070, 1
      %v1073 = vor.u32 %v1068, %v1072
      %v1075 = vshrl.u32 %v1030, 16
      %v1077 = vshll.u32 %v1030, 16
      %v1079 = vrot.slane %v1077, 1
      %v1080 = vor.u32 %v1075, %v1079
      %v1082 = vshrl.u32 %v1031, 16
      %v1084 = vshll.u32 %v1031, 16
      %v1086 = vrot.slane %v1084, 1
      %v1087 = vor.u32 %v1082, %v1086
      %1088 = vrot.lane.b32.xlu0 %v1038, 24
      %v1089 = vpop.permute.xlu0 %1088
      %1090 = vrot.lane.b32.xlu0 %v1045, 24
      %v1091 = vpop.permute.xlu0 %1090
      %1092 = vrot.lane.b32.xlu0 %v1052, 24
      %v1093 = vpop.permute.xlu0 %1092
      %1094 = vrot.lane.b32.xlu0 %v1059, 24
      %v1095 = vpop.permute.xlu0 %1094
      %1096 = vrot.lane.b32.xlu0 %v1066, 24
      %v1097 = vpop.permute.xlu0 %1096
      %1098 = vrot.lane.b32.xlu0 %v1073, 24
      %v1099 = vpop.permute.xlu0 %1098
      %1100 = vrot.lane.b32.xlu0 %v1080, 24
      %v1101 = vpop.permute.xlu0 %1100
      %1102 = vrot.lane.b32.xlu0 %v1087, 24
      %v1103 = vpop.permute.xlu0 %1102
      %v1112 = vunpack.c.l.b16 %v446
      %v1113 = vunpack.c.l.b16 %v447
      %v1114 = vunpack.c.l.b16 %v448
      %v1115 = vunpack.c.l.b16 %v449
      %v1116 = vunpack.c.l.b16 %v450
      %v1117 = vunpack.c.l.b16 %v451
      %v1118 = vunpack.c.l.b16 %v452
      %v1119 = vunpack.c.l.b16 %v453
      %v1120 = vpack.c.b16 %v1112, %v1112
      %v1121 = vpack.c.b16 %v1113, %v1113
      %v1122 = vpack.c.b16 %v1114, %v1114
      %v1123 = vpack.c.b16 %v1115, %v1115
      %v1124 = vpack.c.b16 %v1116, %v1116
      %v1125 = vpack.c.b16 %v1117, %v1117
      %v1126 = vpack.c.b16 %v1118, %v1118
      %v1127 = vpack.c.b16 %v1119, %v1119
      %1128 = vrot.lane.b32.xlu0 %v1120, 27
      %v1129 = vpop.permute.xlu0 %1128
      %1130 = vrot.lane.b32.xlu0 %v1121, 27
      %v1131 = vpop.permute.xlu0 %1130
      %1132 = vrot.lane.b32.xlu0 %v1122, 27
      %v1133 = vpop.permute.xlu0 %1132
      %1134 = vrot.lane.b32.xlu0 %v1123, 27
      %v1135 = vpop.permute.xlu0 %1134
      %1136 = vrot.lane.b32.xlu0 %v1124, 27
      %v1137 = vpop.permute.xlu0 %1136
      %1138 = vrot.lane.b32.xlu0 %v1125, 27
      %v1139 = vpop.permute.xlu0 %1138
      %1140 = vrot.lane.b32.xlu0 %v1126, 27
      %v1141 = vpop.permute.xlu0 %1140
      %1142 = vrot.lane.b32.xlu0 %v1127, 27
      %v1143 = vpop.permute.xlu0 %1142
      %v1152 = vunpack.c.l.b16 %v455
      %v1153 = vunpack.c.l.b16 %v456
      %v1154 = vunpack.c.l.b16 %v457
      %v1155 = vunpack.c.l.b16 %v458
      %v1156 = vunpack.c.l.b16 %v459
      %v1157 = vunpack.c.l.b16 %v460
      %v1158 = vunpack.c.l.b16 %v461
      %v1159 = vunpack.c.l.b16 %v462
      %v1160 = vpack.c.b16 %v1152, %v1152
      %v1161 = vpack.c.b16 %v1153, %v1153
      %v1162 = vpack.c.b16 %v1154, %v1154
      %v1163 = vpack.c.b16 %v1155, %v1155
      %v1164 = vpack.c.b16 %v1156, %v1156
      %v1165 = vpack.c.b16 %v1157, %v1157
      %v1166 = vpack.c.b16 %v1158, %v1158
      %v1167 = vpack.c.b16 %v1159, %v1159
      %1168 = vrot.lane.b32.xlu0 %v1160, 30
      %v1169 = vpop.permute.xlu0 %1168
      %1170 = vrot.lane.b32.xlu0 %v1161, 30
      %v1171 = vpop.permute.xlu0 %1170
      %1172 = vrot.lane.b32.xlu0 %v1162, 30
      %v1173 = vpop.permute.xlu0 %1172
      %1174 = vrot.lane.b32.xlu0 %v1163, 30
      %v1175 = vpop.permute.xlu0 %1174
      %1176 = vrot.lane.b32.xlu0 %v1164, 30
      %v1177 = vpop.permute.xlu0 %1176
      %1178 = vrot.lane.b32.xlu0 %v1165, 30
      %v1179 = vpop.permute.xlu0 %1178
      %1180 = vrot.lane.b32.xlu0 %v1166, 30
      %v1181 = vpop.permute.xlu0 %1180
      %1182 = vrot.lane.b32.xlu0 %v1167, 30
      %v1183 = vpop.permute.xlu0 %1182
      %v1192 = vunpack.c.l.b16 %v463
      %v1193 = vunpack.c.l.b16 %v464
      %v1194 = vunpack.c.l.b16 %v465
      %v1195 = vunpack.c.l.b16 %v466
      %v1196 = vunpack.c.l.b16 %v467
      %v1197 = vunpack.c.l.b16 %v468
      %v1198 = vunpack.c.l.b16 %v469
      %v1199 = vunpack.c.l.b16 %v470
      %v1200 = vpack.c.b16 %v1192, %v1112
      %v1201 = vpack.c.b16 %v1193, %v1113
      %v1202 = vpack.c.b16 %v1194, %v1114
      %v1203 = vpack.c.b16 %v1195, %v1115
      %v1204 = vpack.c.b16 %v1196, %v1116
      %v1205 = vpack.c.b16 %v1197, %v1117
      %v1206 = vpack.c.b16 %v1198, %v1118
      %v1207 = vpack.c.b16 %v1199, %v1119
      %v1209 = vshrl.u32 %v1200, 16
      %v1211 = vshll.u32 %v1200, 16
      %v1213 = vrot.slane %v1211, 1
      %v1214 = vor.u32 %v1209, %v1213
      %v1216 = vshrl.u32 %v1201, 16
      %v1218 = vshll.u32 %v1201, 16
      %v1220 = vrot.slane %v1218, 1
      %v1221 = vor.u32 %v1216, %v1220
      %v1223 = vshrl.u32 %v1202, 16
      %v1225 = vshll.u32 %v1202, 16
      %v1227 = vrot.slane %v1225, 1
      %v1228 = vor.u32 %v1223, %v1227
      %v1230 = vshrl.u32 %v1203, 16
      %v1232 = vshll.u32 %v1203, 16
      %v1234 = vrot.slane %v1232, 1
      %v1235 = vor.u32 %v1230, %v1234
      %v1237 = vshrl.u32 %v1204, 16
      %v1239 = vshll.u32 %v1204, 16
      %v1241 = vrot.slane %v1239, 1
      %v1242 = vor.u32 %v1237, %v1241
      %v1244 = vshrl.u32 %v1205, 16
      %v1246 = vshll.u32 %v1205, 16
      %v1248 = vrot.slane %v1246, 1
      %v1249 = vor.u32 %v1244, %v1248
      %v1251 = vshrl.u32 %v1206, 16
      %v1253 = vshll.u32 %v1206, 16
      %v1255 = vrot.slane %v1253, 1
      %v1256 = vor.u32 %v1251, %v1255
      %v1258 = vshrl.u32 %v1207, 16
      %v1260 = vshll.u32 %v1207, 16
      %v1262 = vrot.slane %v1260, 1
      %v1263 = vor.u32 %v1258, %v1262
      %1264 = vrot.lane.b32.xlu0 %v1214, 33
      %v1265 = vpop.permute.xlu0 %1264
      %1266 = vrot.lane.b32.xlu0 %v1221, 33
      %v1267 = vpop.permute.xlu0 %1266
      %1268 = vrot.lane.b32.xlu0 %v1228, 33
      %v1269 = vpop.permute.xlu0 %1268
      %1270 = vrot.lane.b32.xlu0 %v1235, 33
      %v1271 = vpop.permute.xlu0 %1270
      %1272 = vrot.lane.b32.xlu0 %v1242, 33
      %v1273 = vpop.permute.xlu0 %1272
      %1274 = vrot.lane.b32.xlu0 %v1249, 33
      %v1275 = vpop.permute.xlu0 %1274
      %1276 = vrot.lane.b32.xlu0 %v1256, 33
      %v1277 = vpop.permute.xlu0 %1276
      %1278 = vrot.lane.b32.xlu0 %v1263, 33
      %v1279 = vpop.permute.xlu0 %1278
      %v1288 = vunpack.c.l.b16 %v472
      %v1289 = vunpack.c.l.b16 %v473
      %v1290 = vunpack.c.l.b16 %v474
      %v1291 = vunpack.c.l.b16 %v475
      %v1292 = vunpack.c.l.b16 %v476
      %v1293 = vunpack.c.l.b16 %v477
      %v1294 = vunpack.c.l.b16 %v478
      %v1295 = vunpack.c.l.b16 %v479
      %v1296 = vpack.c.b16 %v1288, %v1288
      %v1297 = vpack.c.b16 %v1289, %v1289
      %v1298 = vpack.c.b16 %v1290, %v1290
      %v1299 = vpack.c.b16 %v1291, %v1291
      %v1300 = vpack.c.b16 %v1292, %v1292
      %v1301 = vpack.c.b16 %v1293, %v1293
      %v1302 = vpack.c.b16 %v1294, %v1294
      %v1303 = vpack.c.b16 %v1295, %v1295
      %1304 = vrot.lane.b32.xlu0 %v1296, 36
      %v1305 = vpop.permute.xlu0 %1304
      %1306 = vrot.lane.b32.xlu0 %v1297, 36
      %v1307 = vpop.permute.xlu0 %1306
      %1308 = vrot.lane.b32.xlu0 %v1298, 36
      %v1309 = vpop.permute.xlu0 %1308
      %1310 = vrot.lane.b32.xlu0 %v1299, 36
      %v1311 = vpop.permute.xlu0 %1310
      %1312 = vrot.lane.b32.xlu0 %v1300, 36
      %v1313 = vpop.permute.xlu0 %1312
      %1314 = vrot.lane.b32.xlu0 %v1301, 36
      %v1315 = vpop.permute.xlu0 %1314
      %1316 = vrot.lane.b32.xlu0 %v1302, 36
      %v1317 = vpop.permute.xlu0 %1316
      %1318 = vrot.lane.b32.xlu0 %v1303, 36
      %v1319 = vpop.permute.xlu0 %1318
      %v1328 = vunpack.c.l.b16 %v481
      %v1329 = vunpack.c.l.b16 %v482
      %v1330 = vunpack.c.l.b16 %v483
      %v1331 = vunpack.c.l.b16 %v484
      %v1332 = vunpack.c.l.b16 %v485
      %v1333 = vunpack.c.l.b16 %v486
      %v1334 = vunpack.c.l.b16 %v487
      %v1335 = vunpack.c.l.b16 %v488
      %v1336 = vpack.c.b16 %v1328, %v1328
      %v1337 = vpack.c.b16 %v1329, %v1329
      %v1338 = vpack.c.b16 %v1330, %v1330
      %v1339 = vpack.c.b16 %v1331, %v1331
      %v1340 = vpack.c.b16 %v1332, %v1332
      %v1341 = vpack.c.b16 %v1333, %v1333
      %v1342 = vpack.c.b16 %v1334, %v1334
      %v1343 = vpack.c.b16 %v1335, %v1335
      %1344 = vrot.lane.b32.xlu0 %v1336, 39
      %v1345 = vpop.permute.xlu0 %1344
      %1346 = vrot.lane.b32.xlu0 %v1337, 39
      %v1347 = vpop.permute.xlu0 %1346
      %1348 = vrot.lane.b32.xlu0 %v1338, 39
      %v1349 = vpop.permute.xlu0 %1348
      %1350 = vrot.lane.b32.xlu0 %v1339, 39
      %v1351 = vpop.permute.xlu0 %1350
      %1352 = vrot.lane.b32.xlu0 %v1340, 39
      %v1353 = vpop.permute.xlu0 %1352
      %1354 = vrot.lane.b32.xlu0 %v1341, 39
      %v1355 = vpop.permute.xlu0 %1354
      %1356 = vrot.lane.b32.xlu0 %v1342, 39
      %v1357 = vpop.permute.xlu0 %1356
      %1358 = vrot.lane.b32.xlu0 %v1343, 39
      %v1359 = vpop.permute.xlu0 %1358
      %v1368 = vunpack.c.l.b16 %v489
      %v1369 = vunpack.c.l.b16 %v490
      %v1370 = vunpack.c.l.b16 %v491
      %v1371 = vunpack.c.l.b16 %v492
      %v1372 = vunpack.c.l.b16 %v493
      %v1373 = vunpack.c.l.b16 %v494
      %v1374 = vunpack.c.l.b16 %v495
      %v1375 = vunpack.c.l.b16 %v496
      %v1376 = vpack.c.b16 %v1368, %v1288
      %v1377 = vpack.c.b16 %v1369, %v1289
      %v1378 = vpack.c.b16 %v1370, %v1290
      %v1379 = vpack.c.b16 %v1371, %v1291
      %v1380 = vpack.c.b16 %v1372, %v1292
      %v1381 = vpack.c.b16 %v1373, %v1293
      %v1382 = vpack.c.b16 %v1374, %v1294
      %v1383 = vpack.c.b16 %v1375, %v1295
      %v1385 = vshrl.u32 %v1376, 16
      %v1387 = vshll.u32 %v1376, 16
      %v1389 = vrot.slane %v1387, 1
      %v1390 = vor.u32 %v1385, %v1389
      %v1392 = vshrl.u32 %v1377, 16
      %v1394 = vshll.u32 %v1377, 16
      %v1396 = vrot.slane %v1394, 1
      %v1397 = vor.u32 %v1392, %v1396
      %v1399 = vshrl.u32 %v1378, 16
      %v1401 = vshll.u32 %v1378, 16
      %v1403 = vrot.slane %v1401, 1
      %v1404 = vor.u32 %v1399, %v1403
      %v1406 = vshrl.u32 %v1379, 16
      %v1408 = vshll.u32 %v1379, 16
      %v1410 = vrot.slane %v1408, 1
      %v1411 = vor.u32 %v1406, %v1410
      %v1413 = vshrl.u32 %v1380, 16
      %v1415 = vshll.u32 %v1380, 16
      %v1417 = vrot.slane %v1415, 1
      %v1418 = vor.u32 %v1413, %v1417
      %v1420 = vshrl.u32 %v1381, 16
      %v1422 = vshll.u32 %v1381, 16
      %v1424 = vrot.slane %v1422, 1
      %v1425 = vor.u32 %v1420, %v1424
      %v1427 = vshrl.u32 %v1382, 16
      %v1429 = vshll.u32 %v1382, 16
      %v1431 = vrot.slane %v1429, 1
      %v1432 = vor.u32 %v1427, %v1431
      %v1434 = vshrl.u32 %v1383, 16
      %v1436 = vshll.u32 %v1383, 16
      %v1438 = vrot.slane %v1436, 1
      %v1439 = vor.u32 %v1434, %v1438
      %1440 = vrot.lane.b32.xlu0 %v1390, 42
      %v1441 = vpop.permute.xlu0 %1440
      %1442 = vrot.lane.b32.xlu0 %v1397, 42
      %v1443 = vpop.permute.xlu0 %1442
      %1444 = vrot.lane.b32.xlu0 %v1404, 42
      %v1445 = vpop.permute.xlu0 %1444
      %1446 = vrot.lane.b32.xlu0 %v1411, 42
      %v1447 = vpop.permute.xlu0 %1446
      %1448 = vrot.lane.b32.xlu0 %v1418, 42
      %v1449 = vpop.permute.xlu0 %1448
      %1450 = vrot.lane.b32.xlu0 %v1425, 42
      %v1451 = vpop.permute.xlu0 %1450
      %1452 = vrot.lane.b32.xlu0 %v1432, 42
      %v1453 = vpop.permute.xlu0 %1452
      %1454 = vrot.lane.b32.xlu0 %v1439, 42
      %v1455 = vpop.permute.xlu0 %1454
      %v1464 = vunpack.c.l.b16 %v498
      %v1465 = vunpack.c.l.b16 %v499
      %v1466 = vunpack.c.l.b16 %v500
      %v1467 = vunpack.c.l.b16 %v501
      %v1468 = vunpack.c.l.b16 %v502
      %v1469 = vunpack.c.l.b16 %v503
      %v1470 = vunpack.c.l.b16 %v504
      %v1471 = vunpack.c.l.b16 %v505
      %v1472 = vpack.c.b16 %v1464, %v1464
      %v1473 = vpack.c.b16 %v1465, %v1465
      %v1474 = vpack.c.b16 %v1466, %v1466
      %v1475 = vpack.c.b16 %v1467, %v1467
      %v1476 = vpack.c.b16 %v1468, %v1468
      %v1477 = vpack.c.b16 %v1469, %v1469
      %v1478 = vpack.c.b16 %v1470, %v1470
      %v1479 = vpack.c.b16 %v1471, %v1471
      %1480 = vrot.lane.b32.xlu0 %v1472, 45
      %v1481 = vpop.permute.xlu0 %1480
      %1482 = vrot.lane.b32.xlu0 %v1473, 45
      %v1483 = vpop.permute.xlu0 %1482
      %1484 = vrot.lane.b32.xlu0 %v1474, 45
      %v1485 = vpop.permute.xlu0 %1484
      %1486 = vrot.lane.b32.xlu0 %v1475, 45
      %v1487 = vpop.permute.xlu0 %1486
      %1488 = vrot.lane.b32.xlu0 %v1476, 45
      %v1489 = vpop.permute.xlu0 %1488
      %1490 = vrot.lane.b32.xlu0 %v1477, 45
      %v1491 = vpop.permute.xlu0 %1490
      %1492 = vrot.lane.b32.xlu0 %v1478, 45
      %v1493 = vpop.permute.xlu0 %1492
      %1494 = vrot.lane.b32.xlu0 %v1479, 45
      %v1495 = vpop.permute.xlu0 %1494
      %vm1496 = vcmask 23552
      %v1499 = vsel %vm1496, %v369, %v625
      %v1502 = vsel %vm1496, %v370, %v627
      %v1505 = vsel %vm1496, %v371, %v629
      %v1508 = vsel %vm1496, %v372, %v631
      %v1511 = vsel %vm1496, %v373, %v633
      %v1514 = vsel %vm1496, %v374, %v635
      %v1517 = vsel %vm1496, %v375, %v637
      %v1520 = vsel %vm1496, %v376, %v639
      %vm1521 = vcmask 48128
      %v1523 = vsel %vm1521, %v1499, %v737
      %v1525 = vsel %vm1521, %v1502, %v739
      %v1527 = vsel %vm1521, %v1505, %v741
      %v1529 = vsel %vm1521, %v1508, %v743
      %v1531 = vsel %vm1521, %v1511, %v745
      %v1533 = vsel %vm1521, %v1514, %v747
      %v1535 = vsel %vm1521, %v1517, %v749
      %v1537 = vsel %vm1521, %v1520, %v751
      %vm1538 = vcmask 72704
      %v1540 = vsel %vm1538, %v1523, %v777
      %v1542 = vsel %vm1538, %v1525, %v779
      %v1544 = vsel %vm1538, %v1527, %v781
      %v1546 = vsel %vm1538, %v1529, %v783
      %v1548 = vsel %vm1538, %v1531, %v785
      %v1550 = vsel %vm1538, %v1533, %v787
      %v1552 = vsel %vm1538, %v1535, %v789
      %v1554 = vsel %vm1538, %v1537, %v791
      %vm1555 = vcmask 97280
      %v1557 = vsel %vm1555, %v1540, %v817
      %v1559 = vsel %vm1555, %v1542, %v819
      %v1561 = vsel %vm1555, %v1544, %v821
      %v1563 = vsel %vm1555, %v1546, %v823
      %v1565 = vsel %vm1555, %v1548, %v825
      %v1567 = vsel %vm1555, %v1550, %v827
      %v1569 = vsel %vm1555, %v1552, %v829
      %v1571 = vsel %vm1555, %v1554, %v831
      %vm1572 = vcmask 121856
      %v1574 = vsel %vm1572, %v1557, %v913
      %v1576 = vsel %vm1572, %v1559, %v915
      %v1578 = vsel %vm1572, %v1561, %v917
      %v1580 = vsel %vm1572, %v1563, %v919
      %v1582 = vsel %vm1572, %v1565, %v921
      %v1584 = vsel %vm1572, %v1567, %v923
      %v1586 = vsel %vm1572, %v1569, %v925
      %v1588 = vsel %vm1572, %v1571, %v927
      %vm1589 = vcmask 146432
      %v1591 = vsel %vm1589, %v1574, %v953
      %v1593 = vsel %vm1589, %v1576, %v955
      %v1595 = vsel %vm1589, %v1578, %v957
      %v1597 = vsel %vm1589, %v1580, %v959
      %v1599 = vsel %vm1589, %v1582, %v961
      %v1601 = vsel %vm1589, %v1584, %v963
      %v1603 = vsel %vm1589, %v1586, %v965
      %v1605 = vsel %vm1589, %v1588, %v967
      %vm1606 = vcmask 171008
      %v1608 = vsel %vm1606, %v1591, %v993
      %v1610 = vsel %vm1606, %v1593, %v995
      %v1612 = vsel %vm1606, %v1595, %v997
      %v1614 = vsel %vm1606, %v1597, %v999
      %v1616 = vsel %vm1606, %v1599, %v1001
      %v1618 = vsel %vm1606, %v1601, %v1003
      %v1620 = vsel %vm1606, %v1603, %v1005
      %v1622 = vsel %vm1606, %v1605, %v1007
      %vm1623 = vcmask 195584
      %v1625 = vsel %vm1623, %v1608, %v1089
      %v1627 = vsel %vm1623, %v1610, %v1091
      %v1629 = vsel %vm1623, %v1612, %v1093
      %v1631 = vsel %vm1623, %v1614, %v1095
      %v1633 = vsel %vm1623, %v1616, %v1097
      %v1635 = vsel %vm1623, %v1618, %v1099
      %v1637 = vsel %vm1623, %v1620, %v1101
      %v1639 = vsel %vm1623, %v1622, %v1103
      %vm1640 = vcmask 220160
      %v1642 = vsel %vm1640, %v1625, %v1129
      %v1644 = vsel %vm1640, %v1627, %v1131
      %v1646 = vsel %vm1640, %v1629, %v1133
      %v1648 = vsel %vm1640, %v1631, %v1135
      %v1650 = vsel %vm1640, %v1633, %v1137
      %v1652 = vsel %vm1640, %v1635, %v1139
      %v1654 = vsel %vm1640, %v1637, %v1141
      %v1656 = vsel %vm1640, %v1639, %v1143
      %vm1657 = vcmask 244736
      %v1659 = vsel %vm1657, %v1642, %v1169
      %v1661 = vsel %vm1657, %v1644, %v1171
      %v1663 = vsel %vm1657, %v1646, %v1173
      %v1665 = vsel %vm1657, %v1648, %v1175
      %v1667 = vsel %vm1657, %v1650, %v1177
      %v1669 = vsel %vm1657, %v1652, %v1179
      %v1671 = vsel %vm1657, %v1654, %v1181
      %v1673 = vsel %vm1657, %v1656, %v1183
      %vm1674 = vcmask 269312
      %v1676 = vsel %vm1674, %v1659, %v1265
      %v1678 = vsel %vm1674, %v1661, %v1267
      %v1680 = vsel %vm1674, %v1663, %v1269
      %v1682 = vsel %vm1674, %v1665, %v1271
      %v1684 = vsel %vm1674, %v1667, %v1273
      %v1686 = vsel %vm1674, %v1669, %v1275
      %v1688 = vsel %vm1674, %v1671, %v1277
      %v1690 = vsel %vm1674, %v1673, %v1279
      %vm1691 = vcmask 293888
      %v1693 = vsel %vm1691, %v1676, %v1305
      %v1695 = vsel %vm1691, %v1678, %v1307
      %v1697 = vsel %vm1691, %v1680, %v1309
      %v1699 = vsel %vm1691, %v1682, %v1311
      %v1701 = vsel %vm1691, %v1684, %v1313
      %v1703 = vsel %vm1691, %v1686, %v1315
      %v1705 = vsel %vm1691, %v1688, %v1317
      %v1707 = vsel %vm1691, %v1690, %v1319
      %vm1708 = vcmask 318464
      %v1710 = vsel %vm1708, %v1693, %v1345
      %v1712 = vsel %vm1708, %v1695, %v1347
      %v1714 = vsel %vm1708, %v1697, %v1349
      %v1716 = vsel %vm1708, %v1699, %v1351
      %v1718 = vsel %vm1708, %v1701, %v1353
      %v1720 = vsel %vm1708, %v1703, %v1355
      %v1722 = vsel %vm1708, %v1705, %v1357
      %v1724 = vsel %vm1708, %v1707, %v1359
      %vm1725 = vcmask 343040
      %v1727 = vsel %vm1725, %v1710, %v1441
      %v1729 = vsel %vm1725, %v1712, %v1443
      %v1731 = vsel %vm1725, %v1714, %v1445
      %v1733 = vsel %vm1725, %v1716, %v1447
      %v1735 = vsel %vm1725, %v1718, %v1449
      %v1737 = vsel %vm1725, %v1720, %v1451
      %v1739 = vsel %vm1725, %v1722, %v1453
      %v1741 = vsel %vm1725, %v1724, %v1455
      %vm1742 = vcmask 367616
      %v1744 = vsel %vm1742, %v1727, %v1481
      %v1746 = vsel %vm1742, %v1729, %v1483
      %v1748 = vsel %vm1742, %v1731, %v1485
      %v1750 = vsel %vm1742, %v1733, %v1487
      %v1752 = vsel %vm1742, %v1735, %v1489
      %v1754 = vsel %vm1742, %v1737, %v1491
      %v1756 = vsel %vm1742, %v1739, %v1493
      %v1758 = vsel %vm1742, %v1741, %v1495
      %v1767 = vunpack.c.l.b16 %v515
      %v1768 = vunpack.c.l.b16 %v516
      %v1769 = vunpack.c.l.b16 %v517
      %v1770 = vunpack.c.l.b16 %v518
      %v1771 = vunpack.c.l.b16 %v519
      %v1772 = vunpack.c.l.b16 %v520
      %v1773 = vunpack.c.l.b16 %v521
      %v1774 = vunpack.c.l.b16 %v522
      %v1775 = vpack.c.b16 %v1767, %v1464
      %v1776 = vpack.c.b16 %v1768, %v1465
      %v1777 = vpack.c.b16 %v1769, %v1466
      %v1778 = vpack.c.b16 %v1770, %v1467
      %v1779 = vpack.c.b16 %v1771, %v1468
      %v1780 = vpack.c.b16 %v1772, %v1469
      %v1781 = vpack.c.b16 %v1773, %v1470
      %v1782 = vpack.c.b16 %v1774, %v1471
      %v1784 = vshrl.u32 %v1775, 16
      %v1786 = vshll.u32 %v1775, 16
      %v1788 = vrot.slane %v1786, 1
      %v1789 = vor.u32 %v1784, %v1788
      %v1791 = vshrl.u32 %v1776, 16
      %v1793 = vshll.u32 %v1776, 16
      %v1795 = vrot.slane %v1793, 1
      %v1796 = vor.u32 %v1791, %v1795
      %v1798 = vshrl.u32 %v1777, 16
      %v1800 = vshll.u32 %v1777, 16
      %v1802 = vrot.slane %v1800, 1
      %v1803 = vor.u32 %v1798, %v1802
      %v1805 = vshrl.u32 %v1778, 16
      %v1807 = vshll.u32 %v1778, 16
      %v1809 = vrot.slane %v1807, 1
      %v1810 = vor.u32 %v1805, %v1809
      %v1812 = vshrl.u32 %v1779, 16
      %v1814 = vshll.u32 %v1779, 16
      %v1816 = vrot.slane %v1814, 1
      %v1817 = vor.u32 %v1812, %v1816
      %v1819 = vshrl.u32 %v1780, 16
      %v1821 = vshll.u32 %v1780, 16
      %v1823 = vrot.slane %v1821, 1
      %v1824 = vor.u32 %v1819, %v1823
      %v1826 = vshrl.u32 %v1781, 16
      %v1828 = vshll.u32 %v1781, 16
      %v1830 = vrot.slane %v1828, 1
      %v1831 = vor.u32 %v1826, %v1830
      %v1833 = vshrl.u32 %v1782, 16
      %v1835 = vshll.u32 %v1782, 16
      %v1837 = vrot.slane %v1835, 1
      %v1838 = vor.u32 %v1833, %v1837
      %1839 = vrot.lane.b32.xlu0 %v1789, 3
      %v1840 = vpop.permute.xlu0 %1839
      %1841 = vrot.lane.b32.xlu0 %v1796, 3
      %v1842 = vpop.permute.xlu0 %1841
      %1843 = vrot.lane.b32.xlu0 %v1803, 3
      %v1844 = vpop.permute.xlu0 %1843
      %1845 = vrot.lane.b32.xlu0 %v1810, 3
      %v1846 = vpop.permute.xlu0 %1845
      %1847 = vrot.lane.b32.xlu0 %v1817, 3
      %v1848 = vpop.permute.xlu0 %1847
      %1849 = vrot.lane.b32.xlu0 %v1824, 3
      %v1850 = vpop.permute.xlu0 %1849
      %1851 = vrot.lane.b32.xlu0 %v1831, 3
      %v1852 = vpop.permute.xlu0 %1851
      %1853 = vrot.lane.b32.xlu0 %v1838, 3
      %v1854 = vpop.permute.xlu0 %1853
      %v1863 = vunpack.c.l.b16 %v523
      %v1864 = vunpack.c.l.b16 %v524
      %v1865 = vunpack.c.l.b16 %v525
      %v1866 = vunpack.c.l.b16 %v526
      %v1867 = vunpack.c.l.b16 %v527
      %v1868 = vunpack.c.l.b16 %v528
      %v1869 = vunpack.c.l.b16 %v529
      %v1870 = vunpack.c.l.b16 %v530
      %v1871 = vpack.c.b16 %v1863, %v1863
      %v1872 = vpack.c.b16 %v1864, %v1864
      %v1873 = vpack.c.b16 %v1865, %v1865
      %v1874 = vpack.c.b16 %v1866, %v1866
      %v1875 = vpack.c.b16 %v1867, %v1867
      %v1876 = vpack.c.b16 %v1868, %v1868
      %v1877 = vpack.c.b16 %v1869, %v1869
      %v1878 = vpack.c.b16 %v1870, %v1870
      %1879 = vrot.lane.b32.xlu0 %v1871, 6
      %v1880 = vpop.permute.xlu0 %1879
      %1881 = vrot.lane.b32.xlu0 %v1872, 6
      %v1882 = vpop.permute.xlu0 %1881
      %1883 = vrot.lane.b32.xlu0 %v1873, 6
      %v1884 = vpop.permute.xlu0 %1883
      %1885 = vrot.lane.b32.xlu0 %v1874, 6
      %v1886 = vpop.permute.xlu0 %1885
      %1887 = vrot.lane.b32.xlu0 %v1875, 6
      %v1888 = vpop.permute.xlu0 %1887
      %1889 = vrot.lane.b32.xlu0 %v1876, 6
      %v1890 = vpop.permute.xlu0 %1889
      %1891 = vrot.lane.b32.xlu0 %v1877, 6
      %v1892 = vpop.permute.xlu0 %1891
      %1893 = vrot.lane.b32.xlu0 %v1878, 6
      %v1894 = vpop.permute.xlu0 %1893
      %v1903 = vunpack.c.l.b16 %v532
      %v1904 = vunpack.c.l.b16 %v533
      %v1905 = vunpack.c.l.b16 %v534
      %v1906 = vunpack.c.l.b16 %v535
      %v1907 = vunpack.c.l.b16 %v536
      %v1908 = vunpack.c.l.b16 %v537
      %v1909 = vunpack.c.l.b16 %v538
      %v1910 = vunpack.c.l.b16 %v539
      %v1911 = vpack.c.b16 %v1903, %v1903
      %v1912 = vpack.c.b16 %v1904, %v1904
      %v1913 = vpack.c.b16 %v1905, %v1905
      %v1914 = vpack.c.b16 %v1906, %v1906
      %v1915 = vpack.c.b16 %v1907, %v1907
      %v1916 = vpack.c.b16 %v1908, %v1908
      %v1917 = vpack.c.b16 %v1909, %v1909
      %v1918 = vpack.c.b16 %v1910, %v1910
      %1919 = vrot.lane.b32.xlu0 %v1911, 9
      %v1920 = vpop.permute.xlu0 %1919
      %1921 = vrot.lane.b32.xlu0 %v1912, 9
      %v1922 = vpop.permute.xlu0 %1921
      %1923 = vrot.lane.b32.xlu0 %v1913, 9
      %v1924 = vpop.permute.xlu0 %1923
      %1925 = vrot.lane.b32.xlu0 %v1914, 9
      %v1926 = vpop.permute.xlu0 %1925
      %1927 = vrot.lane.b32.xlu0 %v1915, 9
      %v1928 = vpop.permute.xlu0 %1927
      %1929 = vrot.lane.b32.xlu0 %v1916, 9
      %v1930 = vpop.permute.xlu0 %1929
      %1931 = vrot.lane.b32.xlu0 %v1917, 9
      %v1932 = vpop.permute.xlu0 %1931
      %1933 = vrot.lane.b32.xlu0 %v1918, 9
      %v1934 = vpop.permute.xlu0 %1933
      %v1943 = vunpack.c.l.b16 %v540
      %v1944 = vunpack.c.l.b16 %v541
      %v1945 = vunpack.c.l.b16 %v542
      %v1946 = vunpack.c.l.b16 %v543
      %v1947 = vunpack.c.l.b16 %v544
      %v1948 = vunpack.c.l.b16 %v545
      %v1949 = vunpack.c.l.b16 %v546
      %v1950 = vunpack.c.l.b16 %v547
      %v1951 = vpack.c.b16 %v1943, %v1863
      %v1952 = vpack.c.b16 %v1944, %v1864
      %v1953 = vpack.c.b16 %v1945, %v1865
      %v1954 = vpack.c.b16 %v1946, %v1866
      %v1955 = vpack.c.b16 %v1947, %v1867
      %v1956 = vpack.c.b16 %v1948, %v1868
      %v1957 = vpack.c.b16 %v1949, %v1869
      %v1958 = vpack.c.b16 %v1950, %v1870
      %v1960 = vshrl.u32 %v1951, 16
      %v1962 = vshll.u32 %v1951, 16
      %v1964 = vrot.slane %v1962, 1
      %v1965 = vor.u32 %v1960, %v1964
      %v1967 = vshrl.u32 %v1952, 16
      %v1969 = vshll.u32 %v1952, 16
      %v1971 = vrot.slane %v1969, 1
      %v1972 = vor.u32 %v1967, %v1971
      %v1974 = vshrl.u32 %v1953, 16
      %v1976 = vshll.u32 %v1953, 16
      %v1978 = vrot.slane %v1976, 1
      %v1979 = vor.u32 %v1974, %v1978
      %v1981 = vshrl.u32 %v1954, 16
      %v1983 = vshll.u32 %v1954, 16
      %v1985 = vrot.slane %v1983, 1
      %v1986 = vor.u32 %v1981, %v1985
      %v1988 = vshrl.u32 %v1955, 16
      %v1990 = vshll.u32 %v1955, 16
      %v1992 = vrot.slane %v1990, 1
      %v1993 = vor.u32 %v1988, %v1992
      %v1995 = vshrl.u32 %v1956, 16
      %v1997 = vshll.u32 %v1956, 16
      %v1999 = vrot.slane %v1997, 1
      %v2000 = vor.u32 %v1995, %v1999
      %v2002 = vshrl.u32 %v1957, 16
      %v2004 = vshll.u32 %v1957, 16
      %v2006 = vrot.slane %v2004, 1
      %v2007 = vor.u32 %v2002, %v2006
      %v2009 = vshrl.u32 %v1958, 16
      %v2011 = vshll.u32 %v1958, 16
      %v2013 = vrot.slane %v2011, 1
      %v2014 = vor.u32 %v2009, %v2013
      %2015 = vrot.lane.b32.xlu0 %v1965, 12
      %v2016 = vpop.permute.xlu0 %2015
      %2017 = vrot.lane.b32.xlu0 %v1972, 12
      %v2018 = vpop.permute.xlu0 %2017
      %2019 = vrot.lane.b32.xlu0 %v1979, 12
      %v2020 = vpop.permute.xlu0 %2019
      %2021 = vrot.lane.b32.xlu0 %v1986, 12
      %v2022 = vpop.permute.xlu0 %2021
      %2023 = vrot.lane.b32.xlu0 %v1993, 12
      %v2024 = vpop.permute.xlu0 %2023
      %2025 = vrot.lane.b32.xlu0 %v2000, 12
      %v2026 = vpop.permute.xlu0 %2025
      %2027 = vrot.lane.b32.xlu0 %v2007, 12
      %v2028 = vpop.permute.xlu0 %2027
      %2029 = vrot.lane.b32.xlu0 %v2014, 12
      %v2030 = vpop.permute.xlu0 %2029
      %v2039 = vunpack.c.l.b16 %v549
      %v2040 = vunpack.c.l.b16 %v550
      %v2041 = vunpack.c.l.b16 %v551
      %v2042 = vunpack.c.l.b16 %v552
      %v2043 = vunpack.c.l.b16 %v553
      %v2044 = vunpack.c.l.b16 %v554
      %v2045 = vunpack.c.l.b16 %v555
      %v2046 = vunpack.c.l.b16 %v556
      %v2047 = vpack.c.b16 %v2039, %v2039
      %v2048 = vpack.c.b16 %v2040, %v2040
      %v2049 = vpack.c.b16 %v2041, %v2041
      %v2050 = vpack.c.b16 %v2042, %v2042
      %v2051 = vpack.c.b16 %v2043, %v2043
      %v2052 = vpack.c.b16 %v2044, %v2044
      %v2053 = vpack.c.b16 %v2045, %v2045
      %v2054 = vpack.c.b16 %v2046, %v2046
      %2055 = vrot.lane.b32.xlu0 %v2047, 15
      %v2056 = vpop.permute.xlu0 %2055
      %2057 = vrot.lane.b32.xlu0 %v2048, 15
      %v2058 = vpop.permute.xlu0 %2057
      %2059 = vrot.lane.b32.xlu0 %v2049, 15
      %v2060 = vpop.permute.xlu0 %2059
      %2061 = vrot.lane.b32.xlu0 %v2050, 15
      %v2062 = vpop.permute.xlu0 %2061
      %2063 = vrot.lane.b32.xlu0 %v2051, 15
      %v2064 = vpop.permute.xlu0 %2063
      %2065 = vrot.lane.b32.xlu0 %v2052, 15
      %v2066 = vpop.permute.xlu0 %2065
      %2067 = vrot.lane.b32.xlu0 %v2053, 15
      %v2068 = vpop.permute.xlu0 %2067
      %2069 = vrot.lane.b32.xlu0 %v2054, 15
      %v2070 = vpop.permute.xlu0 %2069
      %v2079 = vunpack.c.l.b16 %v558
      %v2080 = vunpack.c.l.b16 %v559
      %v2081 = vunpack.c.l.b16 %v560
      %v2082 = vunpack.c.l.b16 %v561
      %v2083 = vunpack.c.l.b16 %v562
      %v2084 = vunpack.c.l.b16 %v563
      %v2085 = vunpack.c.l.b16 %v564
      %v2086 = vunpack.c.l.b16 %v565
      %v2087 = vpack.c.b16 %v2079, %v2079
      %v2088 = vpack.c.b16 %v2080, %v2080
      %v2089 = vpack.c.b16 %v2081, %v2081
      %v2090 = vpack.c.b16 %v2082, %v2082
      %v2091 = vpack.c.b16 %v2083, %v2083
      %v2092 = vpack.c.b16 %v2084, %v2084
      %v2093 = vpack.c.b16 %v2085, %v2085
      %v2094 = vpack.c.b16 %v2086, %v2086
      %2095 = vrot.lane.b32.xlu0 %v2087, 18
      %v2096 = vpop.permute.xlu0 %2095
      %2097 = vrot.lane.b32.xlu0 %v2088, 18
      %v2098 = vpop.permute.xlu0 %2097
      %2099 = vrot.lane.b32.xlu0 %v2089, 18
      %v2100 = vpop.permute.xlu0 %2099
      %2101 = vrot.lane.b32.xlu0 %v2090, 18
      %v2102 = vpop.permute.xlu0 %2101
      %2103 = vrot.lane.b32.xlu0 %v2091, 18
      %v2104 = vpop.permute.xlu0 %2103
      %2105 = vrot.lane.b32.xlu0 %v2092, 18
      %v2106 = vpop.permute.xlu0 %2105
      %2107 = vrot.lane.b32.xlu0 %v2093, 18
      %v2108 = vpop.permute.xlu0 %2107
      %2109 = vrot.lane.b32.xlu0 %v2094, 18
      %v2110 = vpop.permute.xlu0 %2109
      %v2119 = vunpack.c.l.b16 %v566
      %v2120 = vunpack.c.l.b16 %v567
      %v2121 = vunpack.c.l.b16 %v568
      %v2122 = vunpack.c.l.b16 %v569
      %v2123 = vunpack.c.l.b16 %v570
      %v2124 = vunpack.c.l.b16 %v571
      %v2125 = vunpack.c.l.b16 %v572
      %v2126 = vunpack.c.l.b16 %v573
      %v2127 = vpack.c.b16 %v2119, %v2039
      %v2128 = vpack.c.b16 %v2120, %v2040
      %v2129 = vpack.c.b16 %v2121, %v2041
      %v2130 = vpack.c.b16 %v2122, %v2042
      %v2131 = vpack.c.b16 %v2123, %v2043
      %v2132 = vpack.c.b16 %v2124, %v2044
      %v2133 = vpack.c.b16 %v2125, %v2045
      %v2134 = vpack.c.b16 %v2126, %v2046
      %v2136 = vshrl.u32 %v2127, 16
      %v2138 = vshll.u32 %v2127, 16
      %v2140 = vrot.slane %v2138, 1
      %v2141 = vor.u32 %v2136, %v2140
      %v2143 = vshrl.u32 %v2128, 16
      %v2145 = vshll.u32 %v2128, 16
      %v2147 = vrot.slane %v2145, 1
      %v2148 = vor.u32 %v2143, %v2147
      %v2150 = vshrl.u32 %v2129, 16
      %v2152 = vshll.u32 %v2129, 16
      %v2154 = vrot.slane %v2152, 1
      %v2155 = vor.u32 %v2150, %v2154
      %v2157 = vshrl.u32 %v2130, 16
      %v2159 = vshll.u32 %v2130, 16
      %v2161 = vrot.slane %v2159, 1
      %v2162 = vor.u32 %v2157, %v2161
      %v2164 = vshrl.u32 %v2131, 16
      %v2166 = vshll.u32 %v2131, 16
      %v2168 = vrot.slane %v2166, 1
      %v2169 = vor.u32 %v2164, %v2168
      %v2171 = vshrl.u32 %v2132, 16
      %v2173 = vshll.u32 %v2132, 16
      %v2175 = vrot.slane %v2173, 1
      %v2176 = vor.u32 %v2171, %v2175
      %v2178 = vshrl.u32 %v2133, 16
      %v2180 = vshll.u32 %v2133, 16
      %v2182 = vrot.slane %v2180, 1
      %v2183 = vor.u32 %v2178, %v2182
      %v2185 = vshrl.u32 %v2134, 16
      %v2187 = vshll.u32 %v2134, 16
      %v2189 = vrot.slane %v2187, 1
      %v2190 = vor.u32 %v2185, %v2189
      %2191 = vrot.lane.b32.xlu0 %v2141, 21
      %v2192 = vpop.permute.xlu0 %2191
      %2193 = vrot.lane.b32.xlu0 %v2148, 21
      %v2194 = vpop.permute.xlu0 %2193
      %2195 = vrot.lane.b32.xlu0 %v2155, 21
      %v2196 = vpop.permute.xlu0 %2195
      %2197 = vrot.lane.b32.xlu0 %v2162, 21
      %v2198 = vpop.permute.xlu0 %2197
      %2199 = vrot.lane.b32.xlu0 %v2169, 21
      %v2200 = vpop.permute.xlu0 %2199
      %2201 = vrot.lane.b32.xlu0 %v2176, 21
      %v2202 = vpop.permute.xlu0 %2201
      %2203 = vrot.lane.b32.xlu0 %v2183, 21
      %v2204 = vpop.permute.xlu0 %2203
      %2205 = vrot.lane.b32.xlu0 %v2190, 21
      %v2206 = vpop.permute.xlu0 %2205
      %v2215 = vunpack.c.l.b16 %v575
      %v2216 = vunpack.c.l.b16 %v576
      %v2217 = vunpack.c.l.b16 %v577
      %v2218 = vunpack.c.l.b16 %v578
      %v2219 = vunpack.c.l.b16 %v579
      %v2220 = vunpack.c.l.b16 %v580
      %v2221 = vunpack.c.l.b16 %v581
      %v2222 = vunpack.c.l.b16 %v582
      %v2223 = vpack.c.b16 %v2215, %v2215
      %v2224 = vpack.c.b16 %v2216, %v2216
      %v2225 = vpack.c.b16 %v2217, %v2217
      %v2226 = vpack.c.b16 %v2218, %v2218
      %v2227 = vpack.c.b16 %v2219, %v2219
      %v2228 = vpack.c.b16 %v2220, %v2220
      %v2229 = vpack.c.b16 %v2221, %v2221
      %v2230 = vpack.c.b16 %v2222, %v2222
      %2231 = vrot.lane.b32.xlu0 %v2223, 24
      %v2232 = vpop.permute.xlu0 %2231
      %2233 = vrot.lane.b32.xlu0 %v2224, 24
      %v2234 = vpop.permute.xlu0 %2233
      %2235 = vrot.lane.b32.xlu0 %v2225, 24
      %v2236 = vpop.permute.xlu0 %2235
      %2237 = vrot.lane.b32.xlu0 %v2226, 24
      %v2238 = vpop.permute.xlu0 %2237
      %2239 = vrot.lane.b32.xlu0 %v2227, 24
      %v2240 = vpop.permute.xlu0 %2239
      %2241 = vrot.lane.b32.xlu0 %v2228, 24
      %v2242 = vpop.permute.xlu0 %2241
      %2243 = vrot.lane.b32.xlu0 %v2229, 24
      %v2244 = vpop.permute.xlu0 %2243
      %2245 = vrot.lane.b32.xlu0 %v2230, 24
      %v2246 = vpop.permute.xlu0 %2245
      %v2255 = vunpack.c.l.b16 %v584
      %v2256 = vunpack.c.l.b16 %v585
      %v2257 = vunpack.c.l.b16 %v586
      %v2258 = vunpack.c.l.b16 %v587
      %v2259 = vunpack.c.l.b16 %v588
      %v2260 = vunpack.c.l.b16 %v589
      %v2261 = vunpack.c.l.b16 %v590
      %v2262 = vunpack.c.l.b16 %v591
      %v2263 = vpack.c.b16 %v2255, %v2255
      %v2264 = vpack.c.b16 %v2256, %v2256
      %v2265 = vpack.c.b16 %v2257, %v2257
      %v2266 = vpack.c.b16 %v2258, %v2258
      %v2267 = vpack.c.b16 %v2259, %v2259
      %v2268 = vpack.c.b16 %v2260, %v2260
      %v2269 = vpack.c.b16 %v2261, %v2261
      %v2270 = vpack.c.b16 %v2262, %v2262
      %2271 = vrot.lane.b32.xlu0 %v2263, 27
      %v2272 = vpop.permute.xlu0 %2271
      %2273 = vrot.lane.b32.xlu0 %v2264, 27
      %v2274 = vpop.permute.xlu0 %2273
      %2275 = vrot.lane.b32.xlu0 %v2265, 27
      %v2276 = vpop.permute.xlu0 %2275
      %2277 = vrot.lane.b32.xlu0 %v2266, 27
      %v2278 = vpop.permute.xlu0 %2277
      %2279 = vrot.lane.b32.xlu0 %v2267, 27
      %v2280 = vpop.permute.xlu0 %2279
      %2281 = vrot.lane.b32.xlu0 %v2268, 27
      %v2282 = vpop.permute.xlu0 %2281
      %2283 = vrot.lane.b32.xlu0 %v2269, 27
      %v2284 = vpop.permute.xlu0 %2283
      %2285 = vrot.lane.b32.xlu0 %v2270, 27
      %v2286 = vpop.permute.xlu0 %2285
      %v2295 = vunpack.c.l.b16 %v592
      %v2296 = vunpack.c.l.b16 %v593
      %v2297 = vunpack.c.l.b16 %v594
      %v2298 = vunpack.c.l.b16 %v595
      %v2299 = vunpack.c.l.b16 %v596
      %v2300 = vunpack.c.l.b16 %v597
      %v2301 = vunpack.c.l.b16 %v598
      %v2302 = vunpack.c.l.b16 %v599
      %v2303 = vpack.c.b16 %v2295, %v2215
      %v2304 = vpack.c.b16 %v2296, %v2216
      %v2305 = vpack.c.b16 %v2297, %v2217
      %v2306 = vpack.c.b16 %v2298, %v2218
      %v2307 = vpack.c.b16 %v2299, %v2219
      %v2308 = vpack.c.b16 %v2300, %v2220
      %v2309 = vpack.c.b16 %v2301, %v2221
      %v2310 = vpack.c.b16 %v2302, %v2222
      %v2312 = vshrl.u32 %v2303, 16
      %v2314 = vshll.u32 %v2303, 16
      %v2316 = vrot.slane %v2314, 1
      %v2317 = vor.u32 %v2312, %v2316
      %v2319 = vshrl.u32 %v2304, 16
      %v2321 = vshll.u32 %v2304, 16
      %v2323 = vrot.slane %v2321, 1
      %v2324 = vor.u32 %v2319, %v2323
      %v2326 = vshrl.u32 %v2305, 16
      %v2328 = vshll.u32 %v2305, 16
      %v2330 = vrot.slane %v2328, 1
      %v2331 = vor.u32 %v2326, %v2330
      %v2333 = vshrl.u32 %v2306, 16
      %v2335 = vshll.u32 %v2306, 16
      %v2337 = vrot.slane %v2335, 1
      %v2338 = vor.u32 %v2333, %v2337
      %v2340 = vshrl.u32 %v2307, 16
      %v2342 = vshll.u32 %v2307, 16
      %v2344 = vrot.slane %v2342, 1
      %v2345 = vor.u32 %v2340, %v2344
      %v2347 = vshrl.u32 %v2308, 16
      %v2349 = vshll.u32 %v2308, 16
      %v2351 = vrot.slane %v2349, 1
      %v2352 = vor.u32 %v2347, %v2351
      %v2354 = vshrl.u32 %v2309, 16
      %v2356 = vshll.u32 %v2309, 16
      %v2358 = vrot.slane %v2356, 1
      %v2359 = vor.u32 %v2354, %v2358
      %v2361 = vshrl.u32 %v2310, 16
      %v2363 = vshll.u32 %v2310, 16
      %v2365 = vrot.slane %v2363, 1
      %v2366 = vor.u32 %v2361, %v2365
      %2367 = vrot.lane.b32.xlu0 %v2317, 30
      %v2368 = vpop.permute.xlu0 %2367
      %2369 = vrot.lane.b32.xlu0 %v2324, 30
      %v2370 = vpop.permute.xlu0 %2369
      %2371 = vrot.lane.b32.xlu0 %v2331, 30
      %v2372 = vpop.permute.xlu0 %2371
      %2373 = vrot.lane.b32.xlu0 %v2338, 30
      %v2374 = vpop.permute.xlu0 %2373
      %2375 = vrot.lane.b32.xlu0 %v2345, 30
      %v2376 = vpop.permute.xlu0 %2375
      %2377 = vrot.lane.b32.xlu0 %v2352, 30
      %v2378 = vpop.permute.xlu0 %2377
      %2379 = vrot.lane.b32.xlu0 %v2359, 30
      %v2380 = vpop.permute.xlu0 %2379
      %2381 = vrot.lane.b32.xlu0 %v2366, 30
      %v2382 = vpop.permute.xlu0 %2381
      %v2385 = vsel %vm1496, %v507, %v1840
      %v2388 = vsel %vm1496, %v508, %v1842
      %v2391 = vsel %vm1496, %v509, %v1844
      %v2394 = vsel %vm1496, %v510, %v1846
      %v2397 = vsel %vm1496, %v511, %v1848
      %v2400 = vsel %vm1496, %v512, %v1850
      %v2403 = vsel %vm1496, %v513, %v1852
      %v2406 = vsel %vm1496, %v514, %v1854
      %v2408 = vsel %vm1521, %v2385, %v1880
      %v2410 = vsel %vm1521, %v2388, %v1882
      %v2412 = vsel %vm1521, %v2391, %v1884
      %v2414 = vsel %vm1521, %v2394, %v1886
      %v2416 = vsel %vm1521, %v2397, %v1888
      %v2418 = vsel %vm1521, %v2400, %v1890
      %v2420 = vsel %vm1521, %v2403, %v1892
      %v2422 = vsel %vm1521, %v2406, %v1894
      %v2424 = vsel %vm1538, %v2408, %v1920
      %v2426 = vsel %vm1538, %v2410, %v1922
      %v2428 = vsel %vm1538, %v2412, %v1924
      %v2430 = vsel %vm1538, %v2414, %v1926
      %v2432 = vsel %vm1538, %v2416, %v1928
      %v2434 = vsel %vm1538, %v2418, %v1930
      %v2436 = vsel %vm1538, %v2420, %v1932
      %v2438 = vsel %vm1538, %v2422, %v1934
      %v2440 = vsel %vm1555, %v2424, %v2016
      %v2442 = vsel %vm1555, %v2426, %v2018
      %v2444 = vsel %vm1555, %v2428, %v2020
      %v2446 = vsel %vm1555, %v2430, %v2022
      %v2448 = vsel %vm1555, %v2432, %v2024
      %v2450 = vsel %vm1555, %v2434, %v2026
      %v2452 = vsel %vm1555, %v2436, %v2028
      %v2454 = vsel %vm1555, %v2438, %v2030
      %v2456 = vsel %vm1572, %v2440, %v2056
      %v2458 = vsel %vm1572, %v2442, %v2058
      %v2460 = vsel %vm1572, %v2444, %v2060
      %v2462 = vsel %vm1572, %v2446, %v2062
      %v2464 = vsel %vm1572, %v2448, %v2064
      %v2466 = vsel %vm1572, %v2450, %v2066
      %v2468 = vsel %vm1572, %v2452, %v2068
      %v2470 = vsel %vm1572, %v2454, %v2070
      %v2472 = vsel %vm1589, %v2456, %v2096
      %v2474 = vsel %vm1589, %v2458, %v2098
      %v2476 = vsel %vm1589, %v2460, %v2100
      %v2478 = vsel %vm1589, %v2462, %v2102
      %v2480 = vsel %vm1589, %v2464, %v2104
      %v2482 = vsel %vm1589, %v2466, %v2106
      %v2484 = vsel %vm1589, %v2468, %v2108
      %v2486 = vsel %vm1589, %v2470, %v2110
      %v2488 = vsel %vm1606, %v2472, %v2192
      %v2490 = vsel %vm1606, %v2474, %v2194
      %v2492 = vsel %vm1606, %v2476, %v2196
      %v2494 = vsel %vm1606, %v2478, %v2198
      %v2496 = vsel %vm1606, %v2480, %v2200
      %v2498 = vsel %vm1606, %v2482, %v2202
      %v2500 = vsel %vm1606, %v2484, %v2204
      %v2502 = vsel %vm1606, %v2486, %v2206
      %v2504 = vsel %vm1623, %v2488, %v2232
      %v2506 = vsel %vm1623, %v2490, %v2234
      %v2508 = vsel %vm1623, %v2492, %v2236
      %v2510 = vsel %vm1623, %v2494, %v2238
      %v2512 = vsel %vm1623, %v2496, %v2240
      %v2514 = vsel %vm1623, %v2498, %v2242
      %v2516 = vsel %vm1623, %v2500, %v2244
      %v2518 = vsel %vm1623, %v2502, %v2246
      %v2520 = vsel %vm1640, %v2504, %v2272
      %v2522 = vsel %vm1640, %v2506, %v2274
      %v2524 = vsel %vm1640, %v2508, %v2276
      %v2526 = vsel %vm1640, %v2510, %v2278
      %v2528 = vsel %vm1640, %v2512, %v2280
      %v2530 = vsel %vm1640, %v2514, %v2282
      %v2532 = vsel %vm1640, %v2516, %v2284
      %v2534 = vsel %vm1640, %v2518, %v2286
      %v2536 = vsel %vm1657, %v2520, %v2368
      %v2538 = vsel %vm1657, %v2522, %v2370
      %v2540 = vsel %vm1657, %v2524, %v2372
      %v2542 = vsel %vm1657, %v2526, %v2374
      %v2544 = vsel %vm1657, %v2528, %v2376
      %v2546 = vsel %vm1657, %v2530, %v2378
      %v2548 = vsel %vm1657, %v2532, %v2380
      %v2550 = vsel %vm1657, %v2534, %v2382
      %2559 = vrot.lane.b32.xlu0 %v2536, 48
      %v2560 = vpop.permute.xlu0 %2559
      %2561 = vrot.lane.b32.xlu0 %v2538, 48
      %v2562 = vpop.permute.xlu0 %2561
      %2563 = vrot.lane.b32.xlu0 %v2540, 48
      %v2564 = vpop.permute.xlu0 %2563
      %2565 = vrot.lane.b32.xlu0 %v2542, 48
      %v2566 = vpop.permute.xlu0 %2565
      %2567 = vrot.lane.b32.xlu0 %v2544, 48
      %v2568 = vpop.permute.xlu0 %2567
      %2569 = vrot.lane.b32.xlu0 %v2546, 48
      %v2570 = vpop.permute.xlu0 %2569
      %2571 = vrot.lane.b32.xlu0 %v2548, 48
      %v2572 = vpop.permute.xlu0 %2571
      %2573 = vrot.lane.b32.xlu0 %v2550, 48
      %v2574 = vpop.permute.xlu0 %2573
      %vm2575 = vcmask 392192
      %v2577 = vsel %vm2575, %v1744, %v2560
      %v2579 = vsel %vm2575, %v1746, %v2562
      %v2581 = vsel %vm2575, %v1748, %v2564
      %v2583 = vsel %vm2575, %v1750, %v2566
      %v2585 = vsel %vm2575, %v1752, %v2568
      %v2587 = vsel %vm2575, %v1754, %v2570
      %v2589 = vsel %vm2575, %v1756, %v2572
      %v2591 = vsel %vm2575, %v1758, %v2574
      %v2592 = vld [vmem:[%s3] sm:$0xf]
      %v2593 = vld [vmem:[%s3 + $0x4] sm:$0xf]
      %v2594 = vld [vmem:[%s3 + $0x8] sm:$0xf]
      %v2595 = vld [vmem:[%s3 + $0xc] sm:$0xf]
      %v2596 = vld [vmem:[%s3 + $0x10] sm:$0xf]
      %v2597 = vld [vmem:[%s3 + $0x14] sm:$0xf]
      %v2598 = vld [vmem:[%s3 + $0x18] sm:$0xf]
      %v2599 = vld [vmem:[%s3 + $0x1c] sm:$0xf]
      %v2600 = vld [vmem:[%s3 + $0x20] sm:$0xf]
      %v2601 = vld [vmem:[%s3 + $0x24] sm:$0xf]
      %v2602 = vld [vmem:[%s3 + $0x28] sm:$0x1]
      %v2611 = vunpack.c.l.b16 %v2577
      %v2612 = vunpack.c.l.b16 %v2579
      %v2613 = vunpack.c.l.b16 %v2581
      %v2614 = vunpack.c.l.b16 %v2583
      %v2615 = vunpack.c.l.b16 %v2585
      %v2616 = vunpack.c.l.b16 %v2587
      %v2617 = vunpack.c.l.b16 %v2589
      %v2618 = vunpack.c.l.b16 %v2591
      %v2619 = vpack.c.b16 %v2612, %v2611
      %v2620 = vpack.c.b16 %v2614, %v2613
      %v2621 = vpack.c.b16 %v2616, %v2615
      %v2622 = vpack.c.b16 %v2618, %v2617
      %v2634 = vunpack.c.l.b16 %v2592
      %v2635 = vunpack.c.l.b16 %v2593
      %v2636 = vunpack.c.l.b16 %v2594
      %v2637 = vunpack.c.l.b16 %v2595
      %v2638 = vunpack.c.l.b16 %v2596
      %v2639 = vunpack.c.l.b16 %v2597
      %v2640 = vunpack.c.l.b16 %v2598
      %v2641 = vunpack.c.l.b16 %v2599
      %v2642 = vunpack.c.l.b16 %v2600
      %v2643 = vunpack.c.l.b16 %v2601
      %v2644 = vunpack.c.l.b16 %v2602
      %v2645 = vpack.c.b16 %v2635, %v2634
      %v2646 = vpack.c.b16 %v2637, %v2636
      %v2647 = vpack.c.b16 %v2639, %v2638
      %v2648 = vpack.c.b16 %v2641, %v2640
      %v2649 = vpack.c.b16 %v2643, %v2642
      %v2650 = vpack.c.b16 %v2644, %v2644
      %vm2656 = vcmask 662528
      %v2658 = vsel %vm2656, %v2619, 0
      %v2661 = vsel %vm2656, %v2620, 0
      %v2664 = vsel %vm2656, %v2621, 0
      %v2667 = vsel %vm2656, %v2622, 0
      %vm2669 = vcmask 1040384
      %v2670 = vsel 0, 4294967295, 65535
      %v2671 = vsel %vm2669, %v2670, 0
      %v2673 = vand.u32 %v2650, %v2671
      %2675 = vmatprep.subr.bf16.mxu0 0
      %2676 = vmatpush1.bf16.msra.mxu0 %v2645
      %2677 = vmatprep.subr.bf16.mxu0 0
      %2678 = vmatpush1.bf16.msra.mxu0 %v2646
      %2679 = vmatprep.subr.bf16.mxu0 0
      %2680 = vmatpush1.bf16.msra.mxu0 %v2647
      %2681 = vmatprep.subr.bf16.mxu0 0
      %2682 = vmatpush1.bf16.msra.mxu0 %v2648
      %2683 = vmatprep.subr.bf16.mxu0 0
      %2684 = vmatpush1.bf16.msra.mxu0 %v2649
      %2685 = vmatprep.subr.bf16.mxu0 0
      %2686 = vmatpush1.bf16.msra.mxu0 %v2673
      %2687 = vmatprep.subr.bf16.mxu0 0
      %2688 = vmatpush1.bf16.msra.mxu0 0
      %2689 = vmatprep.subr.bf16.mxu0 0
      %2690 = vmatpush1.bf16.msra.mxu0 0
      %2691 = vmatprep.subr.bf16.mxu0 0
      %2692 = vmatpush1.bf16.msra.mxu0 0
      %2693 = vmatprep.subr.bf16.mxu0 0
      %2694 = vmatpush1.bf16.msra.mxu0 0
      %2695 = vmatprep.subr.bf16.mxu0 0
      %2696 = vmatpush1.bf16.msra.mxu0 0
      %2697 = vmatprep.subr.bf16.mxu0 0
      %2698 = vmatpush1.bf16.msra.mxu0 0
      %2699 = vmatprep.subr.bf16.mxu0 0
      %2700 = vmatpush1.bf16.msra.mxu0 0
      %2701 = vmatprep.subr.bf16.mxu0 0
      %2702 = vmatpush1.bf16.msra.mxu0 0
      %2703 = vmatprep.subr.bf16.mxu0 0
      %2704 = vmatpush1.bf16.msra.mxu0 0
      %2705 = vmatprep.subr.bf16.mxu0 0
      %2706 = vmatpush1.bf16.msra.mxu0 0
      %2707 = vmatprep.mubr.bf16.mxu0 0
      %2708 = vmatmul.mubr.bf16.gmra.mrb[0].mxu0 %v2658
      %v2709 = vpop.f32.mrb[0].mxu0
      %v2710 = vadd.f32 0.0, %v2709
      %v2711 = vpop.f32.mrb[0].mxu0
      %v2712 = vpop.f32.mrb[0].mxu0
      %v2713 = vadd.f32 0.0, %v2712
      %v2714 = vpop.f32.mrb[0].mxu0
      %2715 = vmatprep.mubr.bf16.mxu0 0
      %2716 = vmatmul.mubr.bf16.gmra.mrb[0].mxu0 %v2661
      %v2717 = vpop.f32.mrb[0].mxu0
      %v2718 = vadd.f32 0.0, %v2717
      %v2719 = vpop.f32.mrb[0].mxu0
      %v2720 = vpop.f32.mrb[0].mxu0
      %v2721 = vadd.f32 0.0, %v2720
      %v2722 = vpop.f32.mrb[0].mxu0
      %2723 = vmatprep.mubr.bf16.mxu0 0
      %2724 = vmatmul.mubr.bf16.gmra.mrb[0].mxu0 %v2664
      %v2725 = vpop.f32.mrb[0].mxu0
      %v2726 = vadd.f32 0.0, %v2725
      %v2727 = vpop.f32.mrb[0].mxu0
      %v2728 = vpop.f32.mrb[0].mxu0
      %v2729 = vadd.f32 0.0, %v2728
      %v2730 = vpop.f32.mrb[0].mxu0
      %2731 = vmatprep.mubr.bf16.mxu0 0
      %2732 = vmatmul.mubr.bf16.gmra.mrb[0].mxu0 %v2667
      %v2733 = vpop.f32.mrb[0].mxu0
      %v2734 = vadd.f32 0.0, %v2733
      %v2735 = vpop.f32.mrb[0].mxu0
      %v2736 = vpop.f32.mrb[0].mxu0
      %v2737 = vadd.f32 0.0, %v2736
      %v2738 = vpop.f32.mrb[0].mxu0
      %2739 = vdwg.mxu0
      %v2740 = vld [vmem:[%s4] sm:$0x1]
      %v2742 = vlaneseq
      %v2743 = vshrl.u32 %v2742, 7
      %v2744 = vsub.s32 0, %v2743
      %v2745 = vrot.slane %v2740, %v2744
      %v2747 = vmul.f32 %v2710, %v2745
      %v2748 = vmul.f32 %v2713, %v2745
      %v2749 = vmul.f32 %v2718, %v2745
      %v2750 = vmul.f32 %v2721, %v2745
      %v2751 = vmul.f32 %v2726, %v2745
      %v2752 = vmul.f32 %v2729, %v2745
      %v2753 = vmul.f32 %v2734, %v2745
      %v2754 = vmul.f32 %v2737, %v2745
      %v2755 = vld [vmem:[%s5] sm:$0x1]
      %v2757 = vlaneseq
      %v2758 = vshrl.u32 %v2757, 7
      %v2759 = vsub.s32 0, %v2758
      %v2760 = vrot.slane %v2755, %v2759
      %v2762 = vadd.f32 %v2747, %v2760
      %v2763 = vadd.f32 %v2748, %v2760
      %v2764 = vadd.f32 %v2749, %v2760
      %v2765 = vadd.f32 %v2750, %v2760
      %v2766 = vadd.f32 %v2751, %v2760
      %v2767 = vadd.f32 %v2752, %v2760
      %v2768 = vadd.f32 %v2753, %v2760
      %v2769 = vadd.f32 %v2754, %v2760
      %v2770 = vmax.f32 %v2762, 0.0
      %v2771 = vmax.f32 %v2763, 0.0
      %v2772 = vmax.f32 %v2764, 0.0
      %v2773 = vmax.f32 %v2765, 0.0
      %v2774 = vmax.f32 %v2766, 0.0
      %v2775 = vmax.f32 %v2767, 0.0
      %v2776 = vmax.f32 %v2768, 0.0
      %v2777 = vmax.f32 %v2769, 0.0
      %v2787 = vrot.slane 0.0, 7
      %v2788 = vrot.slane %v2770, 7
      %v2789 = vrot.slane %v2771, 7
      %v2790 = vrot.slane %v2772, 7
      %v2791 = vrot.slane %v2773, 7
      %v2792 = vrot.slane %v2774, 7
      %v2793 = vrot.slane %v2775, 7
      %v2794 = vrot.slane %v2776, 7
      %v2795 = vrot.slane %v2777, 7
      %v2805 = vsel %vm2669, 0.0, %v2787
      %v2806 = vsel %vm2669, 0.0, %v2788
      %v2807 = vsel %vm2669, 0.0, %v2789
      %v2808 = vsel %vm2669, 0.0, %v2790
      %v2809 = vsel %vm2669, 0.0, %v2791
      %v2810 = vsel %vm2669, 0.0, %v2792
      %v2811 = vsel %vm2669, 0.0, %v2793
      %v2812 = vsel %vm2669, 0.0, %v2794
      %v2813 = vsel %vm2669, 0.0, %v2795
      %v2814 = vsel %vm2669, %v2787, 0.0
      %v2815 = vsel %vm2669, %v2788, 0.0
      %v2816 = vsel %vm2669, %v2789, 0.0
      %v2817 = vsel %vm2669, %v2790, 0.0
      %v2818 = vsel %vm2669, %v2791, 0.0
      %v2819 = vsel %vm2669, %v2792, 0.0
      %v2820 = vsel %vm2669, %v2793, 0.0
      %v2821 = vsel %vm2669, %v2794, 0.0
      %v2822 = vsel %vm2669, %v2795, 0.0
      %v2841 = vcombine.high %v2805, %v2805
      %v2843 = vunpack.c.l.s4 1983009808
      %v2844 = vunpack.c.0.s8 %v2843
      %v2845 = vlaneseq
      %v2846 = vshrl.u32 %v2845, 7
      %v2847 = vsub.s32 %v2844, %v2846
      %v2848 = vrot.slane %v2805, %v2847
      %v2850 = vunpack.c.l.s4 1983009808
      %v2851 = vunpack.c.0.s8 %v2850
      %v2852 = vlaneseq
      %v2853 = vshrl.u32 %v2852, 7
      %v2854 = vsub.s32 %v2851, %v2853
      %v2855 = vrot.slane %v2841, %v2854
      %v2856 = vcombine.high %v2848, %v2848
      %v2857 = vcombine.high %v2855, %v2855
      %v2859 = vunpack.c.l.s4 1983009808
      %v2860 = vunpack.c.0.s8 %v2859
      %v2861 = vlaneseq
      %v2862 = vshrl.u32 %v2861, 7
      %v2863 = vsub.s32 %v2860, %v2862
      %v2864 = vrot.slane %v2814, %v2863
      %v2865 = vcombine.high %v2806, %v2806
      %v2867 = vunpack.c.l.s4 1983009808
      %v2868 = vunpack.c.0.s8 %v2867
      %v2869 = vlaneseq
      %v2870 = vshrl.u32 %v2869, 7
      %v2871 = vsub.s32 %v2868, %v2870
      %v2872 = vrot.slane %v2806, %v2871
      %v2874 = vunpack.c.l.s4 1983009808
      %v2875 = vunpack.c.0.s8 %v2874
      %v2876 = vlaneseq
      %v2877 = vshrl.u32 %v2876, 7
      %v2878 = vsub.s32 %v2875, %v2877
      %v2879 = vrot.slane %v2865, %v2878
      %v2880 = vcombine.high %v2872, %v2872
      %v2881 = vcombine.high %v2879, %v2879
      %v2883 = vunpack.c.l.s4 1983009808
      %v2884 = vunpack.c.0.s8 %v2883
      %v2885 = vlaneseq
      %v2886 = vshrl.u32 %v2885, 7
      %v2887 = vsub.s32 %v2884, %v2886
      %v2888 = vrot.slane %v2815, %v2887
      %v2889 = vcombine.high %v2807, %v2807
      %v2891 = vunpack.c.l.s4 1983009808
      %v2892 = vunpack.c.0.s8 %v2891
      %v2893 = vlaneseq
      %v2894 = vshrl.u32 %v2893, 7
      %v2895 = vsub.s32 %v2892, %v2894
      %v2896 = vrot.slane %v2807, %v2895
      %v2898 = vunpack.c.l.s4 1983009808
      %v2899 = vunpack.c.0.s8 %v2898
      %v2900 = vlaneseq
      %v2901 = vshrl.u32 %v2900, 7
      %v2902 = vsub.s32 %v2899, %v2901
      %v2903 = vrot.slane %v2889, %v2902
      %v2904 = vcombine.high %v2896, %v2896
      %v2905 = vcombine.high %v2903, %v2903
      %v2907 = vunpack.c.l.s4 1983009808
      %v2908 = vunpack.c.0.s8 %v2907
      %v2909 = vlaneseq
      %v2910 = vshrl.u32 %v2909, 7
      %v2911 = vsub.s32 %v2908, %v2910
      %v2912 = vrot.slane %v2816, %v2911
      %v2913 = vcombine.high %v2808, %v2808
      %v2915 = vunpack.c.l.s4 1983009808
      %v2916 = vunpack.c.0.s8 %v2915
      %v2917 = vlaneseq
      %v2918 = vshrl.u32 %v2917, 7
      %v2919 = vsub.s32 %v2916, %v2918
      %v2920 = vrot.slane %v2808, %v2919
      %v2922 = vunpack.c.l.s4 1983009808
      %v2923 = vunpack.c.0.s8 %v2922
      %v2924 = vlaneseq
      %v2925 = vshrl.u32 %v2924, 7
      %v2926 = vsub.s32 %v2923, %v2925
      %v2927 = vrot.slane %v2913, %v2926
      %v2928 = vcombine.high %v2920, %v2920
      %v2929 = vcombine.high %v2927, %v2927
      %v2931 = vunpack.c.l.s4 1983009808
      %v2932 = vunpack.c.0.s8 %v2931
      %v2933 = vlaneseq
      %v2934 = vshrl.u32 %v2933, 7
      %v2935 = vsub.s32 %v2932, %v2934
      %v2936 = vrot.slane %v2817, %v2935
      %v2937 = vcombine.high %v2809, %v2809
      %v2939 = vunpack.c.l.s4 1983009808
      %v2940 = vunpack.c.0.s8 %v2939
      %v2941 = vlaneseq
      %v2942 = vshrl.u32 %v2941, 7
      %v2943 = vsub.s32 %v2940, %v2942
      %v2944 = vrot.slane %v2809, %v2943
      %v2946 = vunpack.c.l.s4 1983009808
      %v2947 = vunpack.c.0.s8 %v2946
      %v2948 = vlaneseq
      %v2949 = vshrl.u32 %v2948, 7
      %v2950 = vsub.s32 %v2947, %v2949
      %v2951 = vrot.slane %v2937, %v2950
      %v2952 = vcombine.high %v2944, %v2944
      %v2953 = vcombine.high %v2951, %v2951
      %v2955 = vunpack.c.l.s4 1983009808
      %v2956 = vunpack.c.0.s8 %v2955
      %v2957 = vlaneseq
      %v2958 = vshrl.u32 %v2957, 7
      %v2959 = vsub.s32 %v2956, %v2958
      %v2960 = vrot.slane %v2818, %v2959
      %v2961 = vcombine.high %v2810, %v2810
      %v2963 = vunpack.c.l.s4 1983009808
      %v2964 = vunpack.c.0.s8 %v2963
      %v2965 = vlaneseq
      %v2966 = vshrl.u32 %v2965, 7
      %v2967 = vsub.s32 %v2964, %v2966
      %v2968 = vrot.slane %v2810, %v2967
      %v2970 = vunpack.c.l.s4 1983009808
      %v2971 = vunpack.c.0.s8 %v2970
      %v2972 = vlaneseq
      %v2973 = vshrl.u32 %v2972, 7
      %v2974 = vsub.s32 %v2971, %v2973
      %v2975 = vrot.slane %v2961, %v2974
      %v2976 = vcombine.high %v2968, %v2968
      %v2977 = vcombine.high %v2975, %v2975
      %v2979 = vunpack.c.l.s4 1983009808
      %v2980 = vunpack.c.0.s8 %v2979
      %v2981 = vlaneseq
      %v2982 = vshrl.u32 %v2981, 7
      %v2983 = vsub.s32 %v2980, %v2982
      %v2984 = vrot.slane %v2819, %v2983
      %v2985 = vcombine.high %v2811, %v2811
      %v2987 = vunpack.c.l.s4 1983009808
      %v2988 = vunpack.c.0.s8 %v2987
      %v2989 = vlaneseq
      %v2990 = vshrl.u32 %v2989, 7
      %v2991 = vsub.s32 %v2988, %v2990
      %v2992 = vrot.slane %v2811, %v2991
      %v2994 = vunpack.c.l.s4 1983009808
      %v2995 = vunpack.c.0.s8 %v2994
      %v2996 = vlaneseq
      %v2997 = vshrl.u32 %v2996, 7
      %v2998 = vsub.s32 %v2995, %v2997
      %v2999 = vrot.slane %v2985, %v2998
      %v3000 = vcombine.high %v2992, %v2992
      %v3001 = vcombine.high %v2999, %v2999
      %v3003 = vunpack.c.l.s4 1983009808
      %v3004 = vunpack.c.0.s8 %v3003
      %v3005 = vlaneseq
      %v3006 = vshrl.u32 %v3005, 7
      %v3007 = vsub.s32 %v3004, %v3006
      %v3008 = vrot.slane %v2820, %v3007
      %v3009 = vcombine.high %v2812, %v2812
      %v3011 = vunpack.c.l.s4 1983009808
      %v3012 = vunpack.c.0.s8 %v3011
      %v3013 = vlaneseq
      %v3014 = vshrl.u32 %v3013, 7
      %v3015 = vsub.s32 %v3012, %v3014
      %v3016 = vrot.slane %v2812, %v3015
      %v3018 = vunpack.c.l.s4 1983009808
      %v3019 = vunpack.c.0.s8 %v3018
      %v3020 = vlaneseq
      %v3021 = vshrl.u32 %v3020, 7
      %v3022 = vsub.s32 %v3019, %v3021
      %v3023 = vrot.slane %v3009, %v3022
      %v3024 = vcombine.high %v3016, %v3016
      %v3025 = vcombine.high %v3023, %v3023
      %v3027 = vunpack.c.l.s4 1983009808
      %v3028 = vunpack.c.0.s8 %v3027
      %v3029 = vlaneseq
      %v3030 = vshrl.u32 %v3029, 7
      %v3031 = vsub.s32 %v3028, %v3030
      %v3032 = vrot.slane %v2821, %v3031
      %v3033 = vcombine.high %v2813, %v2813
      %v3035 = vunpack.c.l.s4 1983009808
      %v3036 = vunpack.c.0.s8 %v3035
      %v3037 = vlaneseq
      %v3038 = vshrl.u32 %v3037, 7
      %v3039 = vsub.s32 %v3036, %v3038
      %v3040 = vrot.slane %v2813, %v3039
      %v3042 = vunpack.c.l.s4 1983009808
      %v3043 = vunpack.c.0.s8 %v3042
      %v3044 = vlaneseq
      %v3045 = vshrl.u32 %v3044, 7
      %v3046 = vsub.s32 %v3043, %v3045
      %v3047 = vrot.slane %v3033, %v3046
      %v3048 = vcombine.high %v3040, %v3040
      %v3049 = vcombine.high %v3047, %v3047
      %v3051 = vunpack.c.l.s4 1983009808
      %v3052 = vunpack.c.0.s8 %v3051
      %v3053 = vlaneseq
      %v3054 = vshrl.u32 %v3053, 7
      %v3055 = vsub.s32 %v3052, %v3054
      %v3056 = vrot.slane %v2822, %v3055
      %v3102 = vrot.slane %v2848, 7
      %v3103 = vrot.slane %v3102, 2
      %v3104 = vrot.slane %v2856, 7
      %v3105 = vrot.slane %v3104, 2
      %v3106 = vrot.slane %v2855, 7
      %v3107 = vrot.slane %v3106, 2
      %v3108 = vrot.slane %v2857, 7
      %v3109 = vrot.slane %v3108, 2
      %v3110 = vrot.slane %v2872, 7
      %v3111 = vrot.slane %v3110, 2
      %v3112 = vrot.slane %v2880, 7
      %v3113 = vrot.slane %v3112, 2
      %v3114 = vrot.slane %v2879, 7
      %v3115 = vrot.slane %v3114, 2
      %v3116 = vrot.slane %v2881, 7
      %v3117 = vrot.slane %v3116, 2
      %v3118 = vrot.slane %v2896, 7
      %v3119 = vrot.slane %v3118, 2
      %v3120 = vrot.slane %v2904, 7
      %v3121 = vrot.slane %v3120, 2
      %v3122 = vrot.slane %v2903, 7
      %v3123 = vrot.slane %v3122, 2
      %v3124 = vrot.slane %v2905, 7
      %v3125 = vrot.slane %v3124, 2
      %v3126 = vrot.slane %v2920, 7
      %v3127 = vrot.slane %v3126, 2
      %v3128 = vrot.slane %v2928, 7
      %v3129 = vrot.slane %v3128, 2
      %v3130 = vrot.slane %v2927, 7
      %v3131 = vrot.slane %v3130, 2
      %v3132 = vrot.slane %v2929, 7
      %v3133 = vrot.slane %v3132, 2
      %v3134 = vrot.slane %v2944, 7
      %v3135 = vrot.slane %v3134, 2
      %v3136 = vrot.slane %v2952, 7
      %v3137 = vrot.slane %v3136, 2
      %v3138 = vrot.slane %v2951, 7
      %v3139 = vrot.slane %v3138, 2
      %v3140 = vrot.slane %v2953, 7
      %v3141 = vrot.slane %v3140, 2
      %v3142 = vrot.slane %v2968, 7
      %v3143 = vrot.slane %v3142, 2
      %v3144 = vrot.slane %v2976, 7
      %v3145 = vrot.slane %v3144, 2
      %v3146 = vrot.slane %v2975, 7
      %v3147 = vrot.slane %v3146, 2
      %v3148 = vrot.slane %v2977, 7
      %v3149 = vrot.slane %v3148, 2
      %v3150 = vrot.slane %v2992, 7
      %v3151 = vrot.slane %v3150, 2
      %v3152 = vrot.slane %v3000, 7
      %v3153 = vrot.slane %v3152, 2
      %v3154 = vrot.slane %v2999, 7
      %v3155 = vrot.slane %v3154, 2
      %v3156 = vrot.slane %v3001, 7
      %v3157 = vrot.slane %v3156, 2
      %v3158 = vrot.slane %v3016, 7
      %v3159 = vrot.slane %v3158, 2
      %v3160 = vrot.slane %v3024, 7
      %v3161 = vrot.slane %v3160, 2
      %v3162 = vrot.slane %v3023, 7
      %v3163 = vrot.slane %v3162, 2
      %v3164 = vrot.slane %v3025, 7
      %v3165 = vrot.slane %v3164, 2
      %v3166 = vrot.slane %v3040, 7
      %v3167 = vrot.slane %v3166, 2
      %v3168 = vrot.slane %v3048, 7
      %v3169 = vrot.slane %v3168, 2
      %v3170 = vrot.slane %v3047, 7
      %v3171 = vrot.slane %v3170, 2
      %v3172 = vrot.slane %v3049, 7
      %v3173 = vrot.slane %v3172, 2
      %v3210 = vmax.f32 %v2848, %v3103
      %v3211 = vmax.f32 %v2856, %v3105
      %v3212 = vmax.f32 %v2855, %v3107
      %v3213 = vmax.f32 %v2857, %v3109
      %v3214 = vmax.f32 %v2872, %v3111
      %v3215 = vmax.f32 %v2880, %v3113
      %v3216 = vmax.f32 %v2879, %v3115
      %v3217 = vmax.f32 %v2881, %v3117
      %v3218 = vmax.f32 %v2896, %v3119
      %v3219 = vmax.f32 %v2904, %v3121
      %v3220 = vmax.f32 %v2903, %v3123
      %v3221 = vmax.f32 %v2905, %v3125
      %v3222 = vmax.f32 %v2920, %v3127
      %v3223 = vmax.f32 %v2928, %v3129
      %v3224 = vmax.f32 %v2927, %v3131
      %v3225 = vmax.f32 %v2929, %v3133
      %v3226 = vmax.f32 %v2944, %v3135
      %v3227 = vmax.f32 %v2952, %v3137
      %v3228 = vmax.f32 %v2951, %v3139
      %v3229 = vmax.f32 %v2953, %v3141
      %v3230 = vmax.f32 %v2968, %v3143
      %v3231 = vmax.f32 %v2976, %v3145
      %v3232 = vmax.f32 %v2975, %v3147
      %v3233 = vmax.f32 %v2977, %v3149
      %v3234 = vmax.f32 %v2992, %v3151
      %v3235 = vmax.f32 %v3000, %v3153
      %v3236 = vmax.f32 %v2999, %v3155
      %v3237 = vmax.f32 %v3001, %v3157
      %v3238 = vmax.f32 %v3016, %v3159
      %v3239 = vmax.f32 %v3024, %v3161
      %v3240 = vmax.f32 %v3023, %v3163
      %v3241 = vmax.f32 %v3025, %v3165
      %v3242 = vmax.f32 %v3040, %v3167
      %v3243 = vmax.f32 %v3048, %v3169
      %v3244 = vmax.f32 %v3047, %v3171
      %v3245 = vmax.f32 %v3049, %v3173
      %v3246 = vmax.f32 %v3210, %v2856
      %v3247 = vmax.f32 %v3211, %v2855
      %v3248 = vmax.f32 %v3212, %v2857
      %v3249 = vmax.f32 %v3213, %v2864
      %v3250 = vmax.f32 %v3214, %v2880
      %v3251 = vmax.f32 %v3215, %v2879
      %v3252 = vmax.f32 %v3216, %v2881
      %v3253 = vmax.f32 %v3217, %v2888
      %v3254 = vmax.f32 %v3218, %v2904
      %v3255 = vmax.f32 %v3219, %v2903
      %v3256 = vmax.f32 %v3220, %v2905
      %v3257 = vmax.f32 %v3221, %v2912
      %v3258 = vmax.f32 %v3222, %v2928
      %v3259 = vmax.f32 %v3223, %v2927
      %v3260 = vmax.f32 %v3224, %v2929
      %v3261 = vmax.f32 %v3225, %v2936
      %v3262 = vmax.f32 %v3226, %v2952
      %v3263 = vmax.f32 %v3227, %v2951
      %v3264 = vmax.f32 %v3228, %v2953
      %v3265 = vmax.f32 %v3229, %v2960
      %v3266 = vmax.f32 %v3230, %v2976
      %v3267 = vmax.f32 %v3231, %v2975
      %v3268 = vmax.f32 %v3232, %v2977
      %v3269 = vmax.f32 %v3233, %v2984
      %v3270 = vmax.f32 %v3234, %v3000
      %v3271 = vmax.f32 %v3235, %v2999
      %v3272 = vmax.f32 %v3236, %v3001
      %v3273 = vmax.f32 %v3237, %v3008
      %v3274 = vmax.f32 %v3238, %v3024
      %v3275 = vmax.f32 %v3239, %v3023
      %v3276 = vmax.f32 %v3240, %v3025
      %v3277 = vmax.f32 %v3241, %v3032
      %v3278 = vmax.f32 %v3242, %v3048
      %v3279 = vmax.f32 %v3243, %v3047
      %v3280 = vmax.f32 %v3244, %v3049
      %v3281 = vmax.f32 %v3245, %v3056
      %v3282 = vmax.f32 %v3246, %v3250
      %v3283 = vmax.f32 %v3247, %v3251
      %v3284 = vmax.f32 %v3248, %v3252
      %v3285 = vmax.f32 %v3249, %v3253
      %v3286 = vmax.f32 %v3254, %v3258
      %v3287 = vmax.f32 %v3255, %v3259
      %v3288 = vmax.f32 %v3256, %v3260
      %v3289 = vmax.f32 %v3257, %v3261
      %v3290 = vmax.f32 %v3262, %v3266
      %v3291 = vmax.f32 %v3263, %v3267
      %v3292 = vmax.f32 %v3264, %v3268
      %v3293 = vmax.f32 %v3265, %v3269
      %v3294 = vmax.f32 %v3270, %v3274
      %v3295 = vmax.f32 %v3271, %v3275
      %v3296 = vmax.f32 %v3272, %v3276
      %v3297 = vmax.f32 %v3273, %v3277
      %v3298 = vmax.f32 %v3282, %v3254
      %v3299 = vmax.f32 %v3283, %v3255
      %v3300 = vmax.f32 %v3284, %v3256
      %v3301 = vmax.f32 %v3285, %v3257
      %v3302 = vmax.f32 %v3286, %v3262
      %v3303 = vmax.f32 %v3287, %v3263
      %v3304 = vmax.f32 %v3288, %v3264
      %v3305 = vmax.f32 %v3289, %v3265
      %v3306 = vmax.f32 %v3290, %v3270
      %v3307 = vmax.f32 %v3291, %v3271
      %v3308 = vmax.f32 %v3292, %v3272
      %v3309 = vmax.f32 %v3293, %v3273
      %v3310 = vmax.f32 %v3294, %v3278
      %v3311 = vmax.f32 %v3295, %v3279
      %v3312 = vmax.f32 %v3296, %v3280
      %v3313 = vmax.f32 %v3297, %v3281
      %vm3330 = vcmask 1044484
      %v3331 = vsel %vm3330, %v3298, %v3298
      %vm3332 = vcmask 1046534
      %v3333 = vsel %vm3332, %v3298, %v3331
      %v3334 = vrot.slane %v3299, 7
      %vm3335 = vcmask 1041409
      %v3336 = vsel %vm3335, %v3334, %v3333
      %vm3337 = vcmask 1043459
      %v3338 = vsel %vm3337, %v3334, %v3336
      %vm3339 = vcmask 1045509
      %v3340 = vsel %vm3339, %v3334, %v3338
      %vm3341 = vcmask 1047559
      %v3342 = vsel %vm3341, %v3334, %v3340
      %v3343 = vsel %vm3330, %v3300, %v3300
      %v3344 = vsel %vm3332, %v3300, %v3343
      %v3345 = vrot.slane %v3301, 7
      %v3346 = vsel %vm3335, %v3345, %v3344
      %v3347 = vsel %vm3337, %v3345, %v3346
      %v3348 = vsel %vm3339, %v3345, %v3347
      %v3349 = vsel %vm3341, %v3345, %v3348
      %v3350 = vsel %vm3330, %v3302, %v3302
      %v3351 = vsel %vm3332, %v3302, %v3350
      %v3352 = vrot.slane %v3303, 7
      %v3353 = vsel %vm3335, %v3352, %v3351
      %v3354 = vsel %vm3337, %v3352, %v3353
      %v3355 = vsel %vm3339, %v3352, %v3354
      %v3356 = vsel %vm3341, %v3352, %v3355
      %v3357 = vsel %vm3330, %v3304, %v3304
      %v3358 = vsel %vm3332, %v3304, %v3357
      %v3359 = vrot.slane %v3305, 7
      %v3360 = vsel %vm3335, %v3359, %v3358
      %v3361 = vsel %vm3337, %v3359, %v3360
      %v3362 = vsel %vm3339, %v3359, %v3361
      %v3363 = vsel %vm3341, %v3359, %v3362
      %v3364 = vsel %vm3330, %v3306, %v3306
      %v3365 = vsel %vm3332, %v3306, %v3364
      %v3366 = vrot.slane %v3307, 7
      %v3367 = vsel %vm3335, %v3366, %v3365
      %v3368 = vsel %vm3337, %v3366, %v3367
      %v3369 = vsel %vm3339, %v3366, %v3368
      %v3370 = vsel %vm3341, %v3366, %v3369
      %v3371 = vsel %vm3330, %v3308, %v3308
      %v3372 = vsel %vm3332, %v3308, %v3371
      %v3373 = vrot.slane %v3309, 7
      %v3374 = vsel %vm3335, %v3373, %v3372
      %v3375 = vsel %vm3337, %v3373, %v3374
      %v3376 = vsel %vm3339, %v3373, %v3375
      %v3377 = vsel %vm3341, %v3373, %v3376
      %v3378 = vsel %vm3330, %v3310, %v3310
      %v3379 = vsel %vm3332, %v3310, %v3378
      %v3380 = vrot.slane %v3311, 7
      %v3381 = vsel %vm3335, %v3380, %v3379
      %v3382 = vsel %vm3337, %v3380, %v3381
      %v3383 = vsel %vm3339, %v3380, %v3382
      %v3384 = vsel %vm3341, %v3380, %v3383
      %v3385 = vsel %vm3330, %v3312, %v3312
      %v3386 = vsel %vm3332, %v3312, %v3385
      %v3387 = vrot.slane %v3313, 7
      %v3388 = vsel %vm3335, %v3387, %v3386
      %v3389 = vsel %vm3337, %v3387, %v3388
      %v3390 = vsel %vm3339, %v3387, %v3389
      %v3391 = vsel %vm3341, %v3387, %v3390
      %v3400 = vcombine.low %v3342, %v3356
      %v3402 = vunpack.c.l.s4 1934713408
      %v3403 = vunpack.c.0.s8 %v3402
      %v3404 = vlaneseq
      %v3405 = vshrl.u32 %v3404, 7
      %v3406 = vsub.s32 %v3403, %v3405
      %v3407 = vrot.slane %v3400, %v3406
      %v3408 = vcombine.high %v3407, 0.0
      %v3409 = vcombine.low %v3370, %v3384
      %v3411 = vunpack.c.l.s4 1934713408
      %v3412 = vunpack.c.0.s8 %v3411
      %v3413 = vlaneseq
      %v3414 = vshrl.u32 %v3413, 7
      %v3415 = vsub.s32 %v3412, %v3414
      %v3416 = vrot.slane %v3409, %v3415
      %v3417 = vcombine.high %v3416, 0.0
      %v3418 = vcombine.low %v3349, %v3363
      %v3420 = vunpack.c.l.s4 1934713408
      %v3421 = vunpack.c.0.s8 %v3420
      %v3422 = vlaneseq
      %v3423 = vshrl.u32 %v3422, 7
      %v3424 = vsub.s32 %v3421, %v3423
      %v3425 = vrot.slane %v3418, %v3424
      %v3426 = vcombine.high %v3425, 0.0
      %v3427 = vcombine.low %v3377, %v3391
      %v3429 = vunpack.c.l.s4 1934713408
      %v3430 = vunpack.c.0.s8 %v3429
      %v3431 = vlaneseq
      %v3432 = vshrl.u32 %v3431, 7
      %v3433 = vsub.s32 %v3430, %v3432
      %v3434 = vrot.slane %v3427, %v3433
      %v3435 = vcombine.high %v3434, 0.0
      %v3438 = vcombine.low %v3407, %v3416
      %v3440 = vunpack.c.l.s4 1983009808
      %v3441 = vunpack.c.0.s8 %v3440
      %v3442 = vlaneseq
      %v3443 = vshrl.u32 %v3442, 7
      %v3444 = vsub.s32 %v3441, %v3443
      %v3445 = vrot.slane %v3438, %v3444
      %v3449 = vcombine.low %v3408, %v3417
      %v3451 = vunpack.c.l.s4 1983009808
      %v3452 = vunpack.c.0.s8 %v3451
      %v3453 = vlaneseq
      %v3454 = vshrl.u32 %v3453, 7
      %v3455 = vsub.s32 %v3452, %v3454
      %v3456 = vrot.slane %v3449, %v3455
      %3457 = vrot.lane.b32.xlu0 %v3456, 8
      %v3458 = vpop.permute.xlu0 %3457
      %v3462 = vcombine.low %v3425, %v3434
      %v3464 = vunpack.c.l.s4 1983009808
      %v3465 = vunpack.c.0.s8 %v3464
      %v3466 = vlaneseq
      %v3467 = vshrl.u32 %v3466, 7
      %v3468 = vsub.s32 %v3465, %v3467
      %v3469 = vrot.slane %v3462, %v3468
      %3470 = vrot.lane.b32.xlu0 %v3469, 16
      %v3471 = vpop.permute.xlu0 %3470
      %v3475 = vcombine.low %v3426, %v3435
      %v3477 = vunpack.c.l.s4 1983009808
      %v3478 = vunpack.c.0.s8 %v3477
      %v3479 = vlaneseq
      %v3480 = vshrl.u32 %v3479, 7
      %v3481 = vsub.s32 %v3478, %v3480
      %v3482 = vrot.slane %v3475, %v3481
      %3483 = vrot.lane.b32.xlu0 %v3482, 24
      %v3484 = vpop.permute.xlu0 %3483
      %vm3486 = vcmask 64512
      %v3487 = vsel %vm3486, %v3445, %v3458
      %vm3488 = vcmask 130048
      %v3489 = vsel %vm3488, %v3487, %v3471
      %v3490 = vsel %vm1623, %v3489, %v3484
      %vm3491 = vcmask 257024
      %3492 = vst.msk [vmem:[%s365] sm:$0xf] %vm3491, %v3490
      %s3493 = smul.u32 %s21, 4
      %s3494 = sadd.s32 %s3493, %s22
      %p3495 = scmp.lt.s32.totalorder %s3494, 7
      %s3496 = scalar_select %p3495, %s3494, 7
      %s3497 = smul.addr %s3496, 4
      %s3498 = scalar_lea.vmem %s6, %s3497
      // Predicated region
      $region45: #{stem_forward.1} parent=43 // pred_check
        %p3499 = pneg %p208
      $region46: #{stem_forward.1} parent=43 // pred_check_branch
        %3501 = sbr.rel (%p3499) target = $region48
      $region47: #{stem_forward.1} parent=43 // pred_region
        %s3502 = smul.u32 %s21, 4
        %s3503 = sadd.s32 %s3502, %s22
      $region48: #{stem_forward.1} parent=43 // pred_fallthru
        _
    $region44: #{stem_forward.1} parent=5 // pred_fallthru
      _
    %p3504 = scmp.le.s32.totalorder 2, %s12
    // Predicated region
    $region49: #{stem_forward.1} parent=5 // pred_check
      %p3505 = pneg %p3504
    $region50: #{stem_forward.1} parent=5 // pred_check_branch
      %3507 = sbr.rel (%p3505) target = $region52
    $region51: #{stem_forward.1} parent=5 // pred_region
      %s3508 = ssub.s32 %s12, 2
      // Predicated region
      $region53: #{stem_forward.1} parent=51 // pred_check
        %p3509 = pneg %p214
      $region54: #{stem_forward.1} parent=51 // pred_check_branch
        %3511 = sbr.rel (%p3509) target = $region56
      $region55: #{stem_forward.1} parent=51 // pred_region
        %s3512 = smul.u32 %s23, 4
        %s3513 = sadd.s32 %s3512, %s24
        %p3514 = scmp.lt.s32.totalorder %s3513, 7
        %s3515 = scalar_select %p3514, %s3513, 7
        %s3516 = smul.addr %s3515, 4
        %s3517 = scalar_lea.vmem %s6, %s3516
      $region56: #{stem_forward.1} parent=51 // pred_fallthru
        _
    $region52: #{stem_forward.1} parent=5 // pred_fallthru
      _
  $region6: #{stem_forward.1} parent=0 // loop_footer
    %s16 = sadd.s32 1, %s12
  $region7: #{stem_forward.1} parent=0 // loop_footer_branch
    %11 = sbr.rel target = $region3
  $region8: #{stem_forward.1} parent=0 // loop_exit
    _

</llo_original>
